<compile_context>
chip_gen: v7x
topology: tpu7x:2x2x1
jax: 0.10.0
libtpu: 0.0.40
codegen_flags: <defaults>
</compile_context>

<pallas_src>
import math
from functools import partial

import numpy as np
import jax
import jax.numpy as jnp
from jax.experimental import pallas as pl
from jax.experimental.pallas import tpu as pltpu


# --------------------------------------------------------------------------- #
# Kernel A: projection  AX[t, p, n] = sum_k Ash_flat[p, k] * dX[n, t, k]       #
# --------------------------------------------------------------------------- #
def _proj_kernel(a_ref, dxt_ref, out_re_ref, out_im_ref, *, t_blk, p):
    a = a_ref[...]                        # (2P, K) = [Ash_re ; Ash_im]
    for ti in range(t_blk):               # small static unroll; 1 MXU dot / step
        y = jnp.dot(a, dxt_ref[ti], preferred_element_type=jnp.float32)  # (2P, N)
        out_re_ref[ti] = y[:p]            # sublane-aligned static slices
        out_im_ref[ti] = y[p:]


def projection_matmul(a_mat, dxt, *, t_blk):
    Tp, K, N = dxt.shape
    P2 = a_mat.shape[0]
    P = P2 // 2
    num_tb = Tp // t_blk
    grid_spec = pltpu.PrefetchScalarGridSpec(
        num_scalar_prefetch=0,
        grid=(num_tb,),
        in_specs=[pl.BlockSpec((P2, K), lambda t: (0, 0)),
                  pl.BlockSpec((t_blk, K, N), lambda t: (t, 0, 0))],
        out_specs=[pl.BlockSpec((t_blk, P, N), lambda t: (t, 0, 0)),
                   pl.BlockSpec((t_blk, P, N), lambda t: (t, 0, 0))],
    )
    out_shape = (jax.ShapeDtypeStruct((Tp, P, N), jnp.float32),
                 jax.ShapeDtypeStruct((Tp, P, N), jnp.float32))
    return pl.pallas_call(
        partial(_proj_kernel, t_blk=t_blk, p=P),
        out_shape=out_shape,
        grid_spec=grid_spec,
        compiler_params=pltpu.CompilerParams(dimension_semantics=("parallel",)),
    )(a_mat, dxt)


# --------------------------------------------------------------------------- #
# Kernel B: rescaled matrix exponential + running product over time            #
# (batch-in-lanes layout: operands are (m, m, B) with B on the lane axis)       #
# --------------------------------------------------------------------------- #
def _cbmm(ar, ai, br, bi):
    """Complex batched matmul: out[i, j, :] = sum_k a[i, k, :] * b[k, j, :].

    Dense VPU broadcast-FMAs (k-loop of length m); no MXU.
    """
    m = ar.shape[0]
    cr = None
    ci = None
    for k in range(m):
        akr = ar[:, k:k + 1, :]           # (m, 1, B)
        aki = ai[:, k:k + 1, :]
        bkr = br[k:k + 1, :, :]           # (1, m, B)
        bki = bi[k:k + 1, :, :]
        tr = akr * bkr - aki * bki
        ti = akr * bki + aki * bkr
        cr = tr if cr is None else cr + tr
        ci = ti if ci is None else ci + ti
    return cr, ci


_INV_FACT = tuple(1.0 / math.factorial(k) for k in range(15))


def _taylor_expm_ps(ar, ai, eye):
    """exp(A) for ||A||_1 <= 1: degree-14 Taylor, Paterson-Stockmeyer (q = 3).

    6 complex bmms total: A^2, A^3 plus 4 Horner steps in X = A^3.  Chunks are
    built lazily inside the Horner loop to keep live ranges small.
    """
    f = _INV_FACT
    a2r, a2i = _cbmm(ar, ai, ar, ai)
    a3r, a3i = _cbmm(a2r, a2i, ar, ai)
    # top chunk B4 = f12*I + f13*A + f14*A^2
    tr = f[12] * eye + f[13] * ar + f[14] * a2r
    ti = f[13] * ai + f[14] * a2i
    for j in (3, 2, 1, 0):                # (((B4 X + B3) X + B2) X + B1) X + B0
        tr, ti = _cbmm(tr, ti, a3r, a3i)
        tr = tr + f[3 * j] * eye + f[3 * j + 1] * ar + f[3 * j + 2] * a2r
        ti = ti + f[3 * j + 1] * ai + f[3 * j + 2] * a2i
    return tr, ti


def _expm_prod_kernel(s_ref, eye_ref, ax_re_ref, ax_im_ref,
                      out_re_ref, out_im_ref, *, t_blk, channels):
    c = pl.program_id(0)
    tb = pl.program_id(2)
    eye = eye_ref[...]                    # (m, m, nb), resident identity

    @pl.when(tb == 0)
    def _():
        out_re_ref[0] = eye
        out_im_ref[0] = jnp.zeros_like(eye)

    def time_step(ti, carry):
        pr, pi = carry
        ar = ax_re_ref[ti, 0]             # (m, m, nb)
        ai = ax_im_ref[ti, 0]
        # data-dependent scaling & squaring count shared by every lane of this
        # (t, c) block (any s >= ceil(log2(||A||_1)) is mathematically exact).
        s_val = s_ref[(tb * t_blk + ti) * channels + c]
        scale = 1.0 / jnp.left_shift(1, s_val).astype(jnp.float32)   # 2^-s
        er, ei = _taylor_expm_ps(ar * scale, ai * scale, eye)

        def square(_, ce):
            xr, xi = ce
            return _cbmm(xr, xi, xr, xi)

        er, ei = jax.lax.fori_loop(0, s_val, square, (er, ei))
        # left-to-right running product over time (== dyadic_prod result)
        return _cbmm(pr, pi, er, ei)

    pr, pi = jax.lax.fori_loop(0, t_blk, time_step,
                               (out_re_ref[0], out_im_ref[0]),
                               unroll=True)
    out_re_ref[0] = pr
    out_im_ref[0] = pi


def expm_time_product(s_flat, eye, ax_re, ax_im, *, t_blk, lane_block=128):
    Tp, C, m, _, Np = ax_re.shape
    num_tb = Tp // t_blk
    nb = lane_block if Np % lane_block == 0 else Np
    num_nb = Np // nb

    eye_spec = pl.BlockSpec((m, m, nb), lambda c, b, t, s: (0, 0, b))
    in_spec = pl.BlockSpec((t_blk, 1, m, m, nb), lambda c, b, t, s: (t, c, 0, 0, b))
    out_spec = pl.BlockSpec((1, m, m, nb), lambda c, b, t, s: (c, 0, 0, b))

    grid_spec = pltpu.PrefetchScalarGridSpec(
        num_scalar_prefetch=1,
        grid=(C, num_nb, num_tb),
        in_specs=[eye_spec, in_spec, in_spec],
        out_specs=[out_spec, out_spec],
    )
    out_shape = (jax.ShapeDtypeStruct((C, m, m, Np), jnp.float32),
                 jax.ShapeDtypeStruct((C, m, m, Np), jnp.float32))
    return pl.pallas_call(
        partial(_expm_prod_kernel, t_blk=t_blk, channels=C),
        out_shape=out_shape,
        grid_spec=grid_spec,
        compiler_params=pltpu.CompilerParams(
            dimension_semantics=("parallel", "parallel", "arbitrary")),
    )(s_flat, eye, ax_re, ax_im)


# --------------------------------------------------------------------------- #
# Parameter setup + forward wrapper (plain-JAX glue on tiny tensors only)      #
# --------------------------------------------------------------------------- #
def init_development_params(key, input_size, hidden_size, channels):
    # projection.A: (input_size, channels, hidden, hidden) cfloat, normal(std=1).
    k1, k2 = jax.random.split(key)
    shape = (input_size, channels, hidden_size, hidden_size)
    return (jax.random.normal(k1, shape, jnp.float32),
            jax.random.normal(k2, shape, jnp.float32))


def skew_hermitian(a_re, a_im):
    # TODO(synk): the exact `unitary.frame` parametrization from src/PCFGAN is not
    # provided; use the canonical unitary Lie-algebra projection A -> (A - A^H)/2.
    a_re_t = jnp.swapaxes(a_re, -1, -2)
    a_im_t = jnp.swapaxes(a_im, -1, -2)
    return 0.5 * (a_re - a_re_t), 0.5 * (a_im + a_im_t)


def development_layer_forward(x, a_re, a_im, *, channels, hidden_size,
                              include_initial=False, t_blk=4, lane_block=128):
    """x: (N, T, input_size) float32.  Returns (N, channels, hidden, hidden) complex64."""
    N, T, K = x.shape
    m = hidden_size
    C = channels
    P = C * m * m

    x = x.astype(jnp.float32)
    if include_initial:
        x = jnp.concatenate([jnp.zeros((N, 1, K), jnp.float32), x], axis=1)
    dx = x[:, 1:] - x[:, :-1]                                 # (N, Tm1, K); imag == 0
    Tm1 = dx.shape[1]

    # pad time with zero increments: exp(0) = I leaves the product unchanged
    Tp = t_blk * ((Tm1 + t_blk - 1) // t_blk)
    if Tp != Tm1:
        dx = jnp.concatenate(
            [dx, jnp.zeros((N, Tp - Tm1, K), jnp.float32)], axis=1)

    # skew-Hermitian Lie-algebra weights, flattened so row p = c*m*m + i*m + j,
    # with re / im planes stacked so Kernel A does ONE MXU dot per time step
    ash_re, ash_im = skew_hermitian(a_re, a_im)               # (K, C, m, m)
    a_mat_re = ash_re.transpose(1, 2, 3, 0).reshape(P, K)
    a_mat_im = ash_im.transpose(1, 2, 3, 0).reshape(P, K)
    a_mat = jnp.concatenate([a_mat_re, a_mat_im], axis=0)     # (2P, K)

    # Data-dependent squaring counts per (t, c) from a cheap upper bound:
    #   ||AX[n,t,c]||_1 <= sum_k |dX[n,t,k]| * max_j sum_i (|Re|+|Im|)(Ash[k,c,i,j])
    g = jnp.max(jnp.sum(jnp.abs(ash_re) + jnp.abs(ash_im), axis=2), axis=2)   # (K, C)
    bound = jnp.einsum('ntk,kc->ntc', jnp.abs(dx), g)         # (N, Tp, C)
    bmax = jnp.max(bound, axis=0)                             # (Tp, C)
    s = jnp.ceil(jnp.log2(jnp.maximum(bmax, 1.0)))
    s_flat = jnp.minimum(s, 30.0).astype(jnp.int32).reshape(-1)  # index = t*C + c

    # pad batch to a lane-dense width (zero increments -> exp(0) = I; sliced off)
    Np = lane_block * ((N + lane_block - 1) // lane_block)
    if Np != N:
        dx = jnp.concatenate(
            [dx, jnp.zeros((Np - N, Tp, K), jnp.float32)], axis=0)

    # time-major, batch-in-lanes increments for Kernel A (tiny transpose)
    dxt = dx.transpose(1, 2, 0)                               # (Tp, K, Np)

    # Kernel A: AX planes in (Tp, C*m*m, Np) layout, already time-major
    ax_re, ax_im = projection_matmul(a_mat, dxt, t_blk=t_blk)
    ax_re = ax_re.reshape(Tp, C, m, m, Np)                    # contiguous (free) reshape
    ax_im = ax_im.reshape(Tp, C, m, m, Np)

    # identity in batch-in-lanes layout, loaded once and kept resident in VMEM
    eye = jnp.broadcast_to(jnp.eye(m, dtype=jnp.float32)[:, :, None], (m, m, Np))

    # Kernel B: exp(AX_t) (scaling & squaring) + sequential time product
    out_re, out_im = expm_time_product(s_flat, eye, ax_re, ax_im,
                                       t_blk=t_blk, lane_block=lane_block)

    out = jax.lax.complex(out_re, out_im)                     # (C, m, m, Np)
    return out.transpose(3, 0, 1, 2)[:N]                      # (N, C, m, m) complex64


# --------------------------------------------------------------------------- #
# Host-side reference (numpy): exact expm via eigh of the skew-Hermitian AX    #
# --------------------------------------------------------------------------- #
def reference_forward(x_np, ash_np):
    N, T, K = x_np.shape
    _, C, m, _ = ash_np.shape
    dX = (x_np[:, 1:] - x_np[:, :-1]).astype(np.complex128)
    AX = np.einsum('nti,icrs->ntcrs', dX, ash_np)   # (N, T-1, C, m, m), skew-Hermitian
    H = -1j * AX                                    # Hermitian
    w, V = np.linalg.eigh(H)
    E = np.einsum('...ij,...j,...kj->...ik', V, np.exp(1j * w), V.conj())
    out = np.broadcast_to(np.eye(m, dtype=np.complex128), (N, C, m, m)).copy()
    for t in range(T - 1):
        out = out @ E[:, t]
    return out


if __name__ == "__main__":
    N, T, input_size, hidden_size, channels = 32, 12, 5, 8, 4

    key = jax.random.PRNGKey(0)
    kx, kp = jax.random.split(key)
    x = jax.random.normal(kx, (N, T, input_size), jnp.float32)
    a_re, a_im = init_development_params(kp, input_size, hidden_size, channels)

    out = development_layer_forward(x, a_re, a_im,
                                    channels=channels, hidden_size=hidden_size,
                                    t_blk=4)
    out = jax.block_until_ready(out)

    assert out.shape == (N, channels, hidden_size, hidden_size)
    assert out.dtype == jnp.complex64

    ash_re, ash_im = skew_hermitian(a_re, a_im)
    ash_np = np.asarray(ash_re, np.float64) + 1j * np.asarray(ash_im, np.float64)
    ref = reference_forward(np.asarray(x, np.float64), ash_np)
    err = float(np.max(np.abs(np.asarray(out) - ref)))
    if not np.isfinite(err) or err > 2e-2:
        raise AssertionError(f"kernel result mismatch vs reference, max abs err = {err}")

    print("KERNEL_OK")
</pallas_src>

<mosaic_0001>
module attributes {stable_mosaic.version = 11 : i64} {
  func.func @_proj_kernel(%arg0: i32, %arg1: memref<512x5xf32, #tpu.memory_space<vmem>>, %arg2: memref<4x5x128xf32, #tpu.memory_space<vmem>>, %arg3: memref<4x256x128xf32, #tpu.memory_space<vmem>>, %arg4: memref<4x256x128xf32, #tpu.memory_space<vmem>>) attributes {dimension_semantics = [#tpu.dimension_semantics<parallel>], iteration_bounds = array<i64: 3>, scalar_prefetch = 0 : i64, scratch_operands = 0 : i64, tpu.core_type = #tpu.core_type<tc>, window_params = [{pipeline_mode = #tpu.pipeline_mode<synchronous>, transform_indices = @transform_0, window_bounds = array<i64: 512, 5>}, {transform_indices = @transform_1, window_bounds = array<i64: 4, 5, 128>}, {transform_indices = @transform_2, window_bounds = array<i64: 4, 256, 128>}, {transform_indices = @transform_3, window_bounds = array<i64: 4, 256, 128>}]} {
    %c0 = arith.constant 0 : index
    %c0_0 = arith.constant 0 : index
    %0 = vector.load %arg1[%c0, %c0_0] : memref<512x5xf32, #tpu.memory_space<vmem>>, vector<512x5xf32>
    %c0_1 = arith.constant 0 : index
    %c0_2 = arith.constant 0 : index
    %c0_3 = arith.constant 0 : index
    %1 = vector.load %arg2[%c0_1, %c0_2, %c0_3] : memref<4x5x128xf32, #tpu.memory_space<vmem>>, vector<1x5x128xf32>
    %2 = vector.shape_cast %1 : vector<1x5x128xf32> to vector<5x128xf32>
    %cst = arith.constant dense<0.000000e+00> : vector<512x128xf32>
    %3 = tpu.matmul %0, %2, %cst {dimension_numbers = #tpu.dot_dimension_numbers<[1], [0], [0], [1], [0, 0, 1, 1], [], []>} : vector<512x5xf32>, vector<5x128xf32>, vector<512x128xf32> -> vector<512x128xf32>
    %4 = vector.extract_strided_slice %3 {offsets = [0, 0], sizes = [256, 128], strides = [1, 1]} : vector<512x128xf32> to vector<256x128xf32>
    %c0_4 = arith.constant 0 : index
    %c0_5 = arith.constant 0 : index
    %c0_6 = arith.constant 0 : index
    %5 = vector.load %arg3[%c0_4, %c0_5, %c0_6] : memref<4x256x128xf32, #tpu.memory_space<vmem>>, vector<1x256x128xf32>
    %6 = vector.shape_cast %5 : vector<1x256x128xf32> to vector<256x128xf32>
    %7 = vector.shape_cast %4 : vector<256x128xf32> to vector<1x256x128xf32>
    tpu.vector_store %arg3[%c0_4, %c0_5, %c0_6], %7 {strides = array<i32>} : memref<4x256x128xf32, #tpu.memory_space<vmem>>, vector<1x256x128xf32>,
    %8 = vector.extract_strided_slice %3 {offsets = [256, 0], sizes = [256, 128], strides = [1, 1]} : vector<512x128xf32> to vector<256x128xf32>
    %c0_7 = arith.constant 0 : index
    %c0_8 = arith.constant 0 : index
    %c0_9 = arith.constant 0 : index
    %9 = vector.load %arg4[%c0_7, %c0_8, %c0_9] : memref<4x256x128xf32, #tpu.memory_space<vmem>>, vector<1x256x128xf32>
    %10 = vector.shape_cast %9 : vector<1x256x128xf32> to vector<256x128xf32>
    %11 = vector.shape_cast %8 : vector<256x128xf32> to vector<1x256x128xf32>
    tpu.vector_store %arg4[%c0_7, %c0_8, %c0_9], %11 {strides = array<i32>} : memref<4x256x128xf32, #tpu.memory_space<vmem>>, vector<1x256x128xf32>,
    %c1 = arith.constant 1 : index
    %c0_10 = arith.constant 0 : index
    %c0_11 = arith.constant 0 : index
    %12 = vector.load %arg2[%c1, %c0_10, %c0_11] : memref<4x5x128xf32, #tpu.memory_space<vmem>>, vector<1x5x128xf32>
    %13 = vector.shape_cast %12 : vector<1x5x128xf32> to vector<5x128xf32>
    %cst_12 = arith.constant dense<0.000000e+00> : vector<512x128xf32>
    %14 = tpu.matmul %0, %13, %cst_12 {dimension_numbers = #tpu.dot_dimension_numbers<[1], [0], [0], [1], [0, 0, 1, 1], [], []>} : vector<512x5xf32>, vector<5x128xf32>, vector<512x128xf32> -> vector<512x128xf32>
    %15 = vector.extract_strided_slice %14 {offsets = [0, 0], sizes = [256, 128], strides = [1, 1]} : vector<512x128xf32> to vector<256x128xf32>
    %c1_13 = arith.constant 1 : index
    %c0_14 = arith.constant 0 : index
    %c0_15 = arith.constant 0 : index
    %16 = vector.load %arg3[%c1_13, %c0_14, %c0_15] : memref<4x256x128xf32, #tpu.memory_space<vmem>>, vector<1x256x128xf32>
    %17 = vector.shape_cast %16 : vector<1x256x128xf32> to vector<256x128xf32>
    %18 = vector.shape_cast %15 : vector<256x128xf32> to vector<1x256x128xf32>
    tpu.vector_store %arg3[%c1_13, %c0_14, %c0_15], %18 {strides = array<i32>} : memref<4x256x128xf32, #tpu.memory_space<vmem>>, vector<1x256x128xf32>,
    %19 = vector.extract_strided_slice %14 {offsets = [256, 0], sizes = [256, 128], strides = [1, 1]} : vector<512x128xf32> to vector<256x128xf32>
    %c1_16 = arith.constant 1 : index
    %c0_17 = arith.constant 0 : index
    %c0_18 = arith.constant 0 : index
    %20 = vector.load %arg4[%c1_16, %c0_17, %c0_18] : memref<4x256x128xf32, #tpu.memory_space<vmem>>, vector<1x256x128xf32>
    %21 = vector.shape_cast %20 : vector<1x256x128xf32> to vector<256x128xf32>
    %22 = vector.shape_cast %19 : vector<256x128xf32> to vector<1x256x128xf32>
    tpu.vector_store %arg4[%c1_16, %c0_17, %c0_18], %22 {strides = array<i32>} : memref<4x256x128xf32, #tpu.memory_space<vmem>>, vector<1x256x128xf32>,
    %c2 = arith.constant 2 : index
    %c0_19 = arith.constant 0 : index
    %c0_20 = arith.constant 0 : index
    %23 = vector.load %arg2[%c2, %c0_19, %c0_20] : memref<4x5x128xf32, #tpu.memory_space<vmem>>, vector<1x5x128xf32>
    %24 = vector.shape_cast %23 : vector<1x5x128xf32> to vector<5x128xf32>
    %cst_21 = arith.constant dense<0.000000e+00> : vector<512x128xf32>
    %25 = tpu.matmul %0, %24, %cst_21 {dimension_numbers = #tpu.dot_dimension_numbers<[1], [0], [0], [1], [0, 0, 1, 1], [], []>} : vector<512x5xf32>, vector<5x128xf32>, vector<512x128xf32> -> vector<512x128xf32>
    %26 = vector.extract_strided_slice %25 {offsets = [0, 0], sizes = [256, 128], strides = [1, 1]} : vector<512x128xf32> to vector<256x128xf32>
    %c2_22 = arith.constant 2 : index
    %c0_23 = arith.constant 0 : index
    %c0_24 = arith.constant 0 : index
    %27 = vector.load %arg3[%c2_22, %c0_23, %c0_24] : memref<4x256x128xf32, #tpu.memory_space<vmem>>, vector<1x256x128xf32>
    %28 = vector.shape_cast %27 : vector<1x256x128xf32> to vector<256x128xf32>
    %29 = vector.shape_cast %26 : vector<256x128xf32> to vector<1x256x128xf32>
    tpu.vector_store %arg3[%c2_22, %c0_23, %c0_24], %29 {strides = array<i32>} : memref<4x256x128xf32, #tpu.memory_space<vmem>>, vector<1x256x128xf32>,
    %30 = vector.extract_strided_slice %25 {offsets = [256, 0], sizes = [256, 128], strides = [1, 1]} : vector<512x128xf32> to vector<256x128xf32>
    %c2_25 = arith.constant 2 : index
    %c0_26 = arith.constant 0 : index
    %c0_27 = arith.constant 0 : index
    %31 = vector.load %arg4[%c2_25, %c0_26, %c0_27] : memref<4x256x128xf32, #tpu.memory_space<vmem>>, vector<1x256x128xf32>
    %32 = vector.shape_cast %31 : vector<1x256x128xf32> to vector<256x128xf32>
    %33 = vector.shape_cast %30 : vector<256x128xf32> to vector<1x256x128xf32>
    tpu.vector_store %arg4[%c2_25, %c0_26, %c0_27], %33 {strides = array<i32>} : memref<4x256x128xf32, #tpu.memory_space<vmem>>, vector<1x256x128xf32>,
    %c3 = arith.constant 3 : index
    %c0_28 = arith.constant 0 : index
    %c0_29 = arith.constant 0 : index
    %34 = vector.load %arg2[%c3, %c0_28, %c0_29] : memref<4x5x128xf32, #tpu.memory_space<vmem>>, vector<1x5x128xf32>
    %35 = vector.shape_cast %34 : vector<1x5x128xf32> to vector<5x128xf32>
    %cst_30 = arith.constant dense<0.000000e+00> : vector<512x128xf32>
    %36 = tpu.matmul %0, %35, %cst_30 {dimension_numbers = #tpu.dot_dimension_numbers<[1], [0], [0], [1], [0, 0, 1, 1], [], []>} : vector<512x5xf32>, vector<5x128xf32>, vector<512x128xf32> -> vector<512x128xf32>
    %37 = vector.extract_strided_slice %36 {offsets = [0, 0], sizes = [256, 128], strides = [1, 1]} : vector<512x128xf32> to vector<256x128xf32>
    %c3_31 = arith.constant 3 : index
    %c0_32 = arith.constant 0 : index
    %c0_33 = arith.constant 0 : index
    %38 = vector.load %arg3[%c3_31, %c0_32, %c0_33] : memref<4x256x128xf32, #tpu.memory_space<vmem>>, vector<1x256x128xf32>
    %39 = vector.shape_cast %38 : vector<1x256x128xf32> to vector<256x128xf32>
    %40 = vector.shape_cast %37 : vector<256x128xf32> to vector<1x256x128xf32>
    tpu.vector_store %arg3[%c3_31, %c0_32, %c0_33], %40 {strides = array<i32>} : memref<4x256x128xf32, #tpu.memory_space<vmem>>, vector<1x256x128xf32>,
    %41 = vector.extract_strided_slice %36 {offsets = [256, 0], sizes = [256, 128], strides = [1, 1]} : vector<512x128xf32> to vector<256x128xf32>
    %c3_34 = arith.constant 3 : index
    %c0_35 = arith.constant 0 : index
    %c0_36 = arith.constant 0 : index
    %42 = vector.load %arg4[%c3_34, %c0_35, %c0_36] : memref<4x256x128xf32, #tpu.memory_space<vmem>>, vector<1x256x128xf32>
    %43 = vector.shape_cast %42 : vector<1x256x128xf32> to vector<256x128xf32>
    %44 = vector.shape_cast %41 : vector<256x128xf32> to vector<1x256x128xf32>
    tpu.vector_store %arg4[%c3_34, %c0_35, %c0_36], %44 {strides = array<i32>} : memref<4x256x128xf32, #tpu.memory_space<vmem>>, vector<1x256x128xf32>,
    return
  }
  func.func @transform_0(%arg0: i32) -> (i32, i32) {
    %c0_i32 = arith.constant 0 : i32
    %c0_i32_0 = arith.constant 0 : i32
    %c0_i32_1 = arith.constant 0 : i32
    return %c0_i32, %c0_i32_0 : i32, i32
  }
  func.func @transform_1(%arg0: i32) -> (i32, i32, i32) {
    %c0_i32 = arith.constant 0 : i32
    %c0_i32_0 = arith.constant 0 : i32
    %c0_i32_1 = arith.constant 0 : i32
    return %arg0, %c0_i32, %c0_i32_0 : i32, i32, i32
  }
  func.func @transform_2(%arg0: i32) -> (i32, i32, i32) {
    %c0_i32 = arith.constant 0 : i32
    %c0_i32_0 = arith.constant 0 : i32
    %c0_i32_1 = arith.constant 0 : i32
    return %arg0, %c0_i32, %c0_i32_0 : i32, i32, i32
  }
  func.func @transform_3(%arg0: i32) -> (i32, i32, i32) {
    %c0_i32 = arith.constant 0 : i32
    %c0_i32_0 = arith.constant 0 : i32
    %c0_i32_1 = arith.constant 0 : i32
    return %arg0, %c0_i32, %c0_i32_0 : i32, i32, i32
  }
}

</mosaic_0001>

<llo_original>
// kernel: tpu_custom_call.1
$region0: #{tpu_custom_call.1}
  #allocation0 [shape = 'u32[]', space=smem, size = 0x4, offset = 0x4, fixed_abs, tag = 'smem constant byte address 0x4 - core index']
  #allocation1 [shape = 'u32[144,128]{1,0:T(1,128)}', space=vmem, size = 0x12000, scoped, tag = 'internal scratch']
  %s0 = inlined_call_operand.vmem [shape: f32[512,5], index: 0, kind: input, shape index: {}]
  %s1 = inlined_call_operand.vmem [shape: f32[12,5,128], index: 1, kind: input, shape index: {}]
  %s2 = inlined_call_operand.hbm [shape: f32[12,256,128], index: 2, kind: output, shape index: {0}]
  %s3 = inlined_call_operand.hbm [shape: f32[12,256,128], index: 3, kind: output, shape index: {1}]
  %4 = xla_tuple %s2, %s3
  %s5 = sld [smem:[#allocation0]]
  $region49: #{tpu_custom_call.1} parent=0
    _
  %s7 = ssub.s32 1, %s5
  %s8 = scalar_select 0, %s7, %s5
  $region1: #{tpu_custom_call.1} parent=0
    #allocation2 [shape = 'u8[1048576]{0}', space=vmem, size = 0x100000, scoped, tag = 'output window, operand 0']
    #allocation3 [shape = 's32[2]{0}', space=sflag, size = 0x8, scoped, tag = 'scoped memory for tpu_custom_call.1']
    #allocation4 [shape = 'u8[1048576]{0}', space=vmem, size = 0x100000, scoped, tag = 'output window, operand 1']
    #allocation5 [shape = 's32[2]{0}', space=sflag, size = 0x8, scoped, tag = 'scoped memory for tpu_custom_call.1']
    %9 = vsyncpa [#allocation3], 0
    %s10 = scalar_lea.sflag [#allocation3], 1
    %11 = vsyncpa %s10, 0
    %12 = vsyncpa [#allocation5], 0
    %s13 = scalar_lea.sflag [#allocation5], 1
    %14 = vsyncpa %s13, 0
    loop: start=0, step=1, limit=5
    $region2: #{tpu_custom_call.1} parent=1 // loop_pre_header
      _
    $region3: #{tpu_custom_call.1} parent=1 // loop_header
      %s16 = sphi 0, %s20
      %p17 = scmp.ge.s32.totalorder %s16, 5
      %s24 = sphi 0, %s24
      %s26 = sphi 0, %s24
      %s27 = sphi 0, %s26
      %s41 = sphi 0, %s27
      %s47 = sphi 0, %s49
      %s50 = sphi 0, %s47
      %s51 = sphi 0, %s50
      %s67 = sphi 0, %s51
      %s73 = sphi 0, %s75
      %s76 = sphi 0, %s73
      %s77 = sphi 0, %s76
      %s93 = sphi 0, %s77
      %s99 = sphi 0, %s101
      %s102 = sphi 0, %s99
      %s103 = sphi 0, %s102
      %s119 = sphi 0, %s103
    $region4: #{tpu_custom_call.1} parent=1 // loop_header_branch
      %19 = sbr.rel (%p17) target = $region8
    $region5: #{tpu_custom_call.1} parent=1 // loop_body
      %s21 = ssub.s32 %s16, 1
      %s22 = ssub.s32 %s16, 2
      %s23 = sadd.s32 %s16, 1
      %s25 = sadd.s32 %s24, 1
      %p28 = scmp.eq.s32.totalorder %s16, 2
      %p29 = scmp.ne.s32.totalorder %s24, %s26
      %p30 = scmp.eq.s32.totalorder %s16, 0
      %p31 = por %p29, %p30
      %p32 = scmp.ne.s32.totalorder %s24, %s26
      %p33 = scmp.eq.s32.totalorder %s21, 2
      %p34 = por %p32, %p33
      %p35 = scmp.ne.s32.totalorder %s26, %s27
      %p36 = scmp.eq.s32.totalorder %s21, 0
      %p37 = por %p35, %p36
      %p38 = scmp.ne.s32.totalorder %s26, %s27
      %p39 = scmp.eq.s32.totalorder %s22, 2
      %p40 = por %p38, %p39
      %p42 = scmp.ne.s32.totalorder %s27, %s41
      %p43 = scmp.eq.s32.totalorder %s22, 0
      %p44 = por %p42, %p43
      %s45 = ssub.s32 %s16, %s23
      %p46 = scmp.eq.s32.totalorder %s45, 0
      %s48 = sadd.s32 %s47, 1
      %s49 = scalar_select %p46, %s47, %s48
      %p52 = pneg %p46
      %p53 = scmp.eq.s32.totalorder %s16, 2
      %p54 = por %p52, %p53
      %p55 = scmp.ne.s32.totalorder %s47, %s50
      %p56 = scmp.eq.s32.totalorder %s16, 0
      %p57 = por %p55, %p56
      %p58 = scmp.ne.s32.totalorder %s47, %s50
      %p59 = scmp.eq.s32.totalorder %s21, 2
      %p60 = por %p58, %p59
      %p61 = scmp.ne.s32.totalorder %s50, %s51
      %p62 = scmp.eq.s32.totalorder %s21, 0
      %p63 = por %p61, %p62
      %p64 = scmp.ne.s32.totalorder %s50, %s51
      %p65 = scmp.eq.s32.totalorder %s22, 2
      %p66 = por %p64, %p65
      %p68 = scmp.ne.s32.totalorder %s51, %s67
      %p69 = scmp.eq.s32.totalorder %s22, 0
      %p70 = por %p68, %p69
      %s71 = ssub.s32 %s16, %s23
      %p72 = scmp.eq.s32.totalorder %s71, 0
      %s74 = sadd.s32 %s73, 1
      %s75 = scalar_select %p72, %s73, %s74
      %p78 = pneg %p72
      %p79 = scmp.eq.s32.totalorder %s16, 2
      %p80 = por %p78, %p79
      %p81 = scmp.ne.s32.totalorder %s73, %s76
      %p82 = scmp.eq.s32.totalorder %s16, 0
      %p83 = por %p81, %p82
      %p84 = scmp.ne.s32.totalorder %s73, %s76
      %p85 = scmp.eq.s32.totalorder %s21, 2
      %p86 = por %p84, %p85
      %p87 = scmp.ne.s32.totalorder %s76, %s77
      %p88 = scmp.eq.s32.totalorder %s21, 0
      %p89 = por %p87, %p88
      %p90 = scmp.ne.s32.totalorder %s76, %s77
      %p91 = scmp.eq.s32.totalorder %s22, 2
      %p92 = por %p90, %p91
      %p94 = scmp.ne.s32.totalorder %s77, %s93
      %p95 = scmp.eq.s32.totalorder %s22, 0
      %p96 = por %p94, %p95
      %s97 = ssub.s32 %s16, %s23
      %p98 = scmp.eq.s32.totalorder %s97, 0
      %s100 = sadd.s32 %s99, 1
      %s101 = scalar_select %p98, %s99, %s100
      %p104 = pneg %p98
      %p105 = scmp.eq.s32.totalorder %s16, 2
      %p106 = por %p104, %p105
      %p107 = scmp.ne.s32.totalorder %s99, %s102
      %p108 = scmp.eq.s32.totalorder %s16, 0
      %p109 = por %p107, %p108
      %p110 = scmp.ne.s32.totalorder %s99, %s102
      %p111 = scmp.eq.s32.totalorder %s21, 2
      %p112 = por %p110, %p111
      %p113 = scmp.ne.s32.totalorder %s102, %s103
      %p114 = scmp.eq.s32.totalorder %s21, 0
      %p115 = por %p113, %p114
      %p116 = scmp.ne.s32.totalorder %s102, %s103
      %p117 = scmp.eq.s32.totalorder %s22, 2
      %p118 = por %p116, %p117
      %p120 = scmp.ne.s32.totalorder %s103, %s119
      %p121 = scmp.eq.s32.totalorder %s22, 0
      %p122 = por %p120, %p121
      %p123 = scmp.le.s32.totalorder 1, %s16
      %p124 = scmp.lt.s32.totalorder %s16, 4
      %p125 = pnand %p123, %p124
      %p126 = pneg %p125
      // Predicated region
      $region9: #{tpu_custom_call.1} parent=5 // pred_check
        _
      $region10: #{tpu_custom_call.1} parent=5 // pred_check_branch
        %128 = sbr.rel (%p125) target = $region12
      $region11: #{tpu_custom_call.1} parent=5 // pred_region
        %s129 = ssub.s32 %s16, 1
        // Predicated region
        $region13: #{tpu_custom_call.1} parent=11 // pred_check
          %p130 = pneg %p37
        $region14: #{tpu_custom_call.1} parent=11 // pred_check_branch
          %132 = sbr.rel (%p130) target = $region16
        $region15: #{tpu_custom_call.1} parent=11 // pred_region
          _
        $region16: #{tpu_custom_call.1} parent=11 // pred_fallthru
          _
      $region12: #{tpu_custom_call.1} parent=5 // pred_fallthru
        _
      %p133 = scmp.lt.s32.totalorder %s16, 3
      // Predicated region
      $region17: #{tpu_custom_call.1} parent=5 // pred_check
        %p134 = pneg %p133
      $region18: #{tpu_custom_call.1} parent=5 // pred_check_branch
        %136 = sbr.rel (%p134) target = $region20
      $region19: #{tpu_custom_call.1} parent=5 // pred_region
        // Predicated region
        $region21: #{tpu_custom_call.1} parent=19 // pred_check
          %p137 = pneg %p57
        $region22: #{tpu_custom_call.1} parent=19 // pred_check_branch
          %139 = sbr.rel (%p137) target = $region24
        $region23: #{tpu_custom_call.1} parent=19 // pred_region
          %s140 = smul.u32 4, %s16
          %p141 = scmp.lt.s32.totalorder %s140, 11
          %s142 = scalar_select %p141, %s140, 11
          %s143 = smul.addr %s142, 8
          %s144 = scalar_lea.vmem %s1, %s143
          %s145 = smul.u32 4, %s16
        $region24: #{tpu_custom_call.1} parent=19 // pred_fallthru
          _
      $region20: #{tpu_custom_call.1} parent=5 // pred_fallthru
        _
      %p146 = scmp.le.s32.totalorder 1, %s16
      %p147 = scmp.lt.s32.totalorder %s16, 4
      %p148 = pnand %p146, %p147
      %p149 = pneg %p148
      // Predicated region
      $region25: #{tpu_custom_call.1} parent=5 // pred_check
        _
      $region26: #{tpu_custom_call.1} parent=5 // pred_check_branch
        %151 = sbr.rel (%p148) target = $region28
      $region27: #{tpu_custom_call.1} parent=5 // pred_region
        %s152 = ssub.s32 %s16, 1
        %p153 = pneg %p37
        %p154 = pneg %p34
        %s155 = smul.u32 4, %s21
        %p156 = scmp.lt.s32.totalorder %s155, 11
        %s157 = scalar_select %p156, %s155, 11
        %s158 = smul.addr %s157, 8
        %s159 = scalar_lea.vmem %s1, %s158
        %p160 = pneg %p63
        %p161 = pneg %p60
        %p162 = pneg %p89
        %p163 = pneg %p86
        %s164 = sand.u32 %s76, 1
        %s165 = scalar_lea.sflag [#allocation3], %s164
        %s166 = sand.u32 %s76, 1
        %s167 = smul.addr %s166, 1024
        %s168 = scalar_lea.vmem [#allocation2], %s167
        %p169 = pneg %p115
        %p170 = pneg %p112
        %s171 = sand.u32 %s102, 1
        %s172 = scalar_lea.sflag [#allocation5], %s171
        %s173 = sand.u32 %s102, 1
        %s174 = smul.addr %s173, 1024
        %s175 = scalar_lea.vmem [#allocation4], %s174
        %s176 = smul.u32 4, %s21
        %p177 = scmp.lt.s32.totalorder %s176, 11
        %s178 = scalar_select %p177, %s176, 11
        %s179 = smul.addr %s178, 8
        %s180 = scalar_lea.vmem %s1, %s179
        %s181 = smul.u32 4, %s21
        %s182 = smul.u32 4, %s21
        %s183 = smul.u32 4, %s21
        %v184 = vld [vmem:[%s0] sm:$0xff]
        %v185 = vld [vmem:[%s0 + $0x8] sm:$0xff]
        %v186 = vld [vmem:[%s0 + $0x10] sm:$0xff]
        %v187 = vld [vmem:[%s0 + $0x18] sm:$0xff]
        %v188 = vld [vmem:[%s0 + $0x20] sm:$0xff]
        %v189 = vld [vmem:[%s0 + $0x28] sm:$0xff]
        %v190 = vld [vmem:[%s0 + $0x30] sm:$0xff]
        %v191 = vld [vmem:[%s0 + $0x38] sm:$0xff]
        %v192 = vld [vmem:[%s0 + $0x40] sm:$0xff]
        %v193 = vld [vmem:[%s0 + $0x48] sm:$0xff]
        %v194 = vld [vmem:[%s0 + $0x50] sm:$0xff]
        %v195 = vld [vmem:[%s0 + $0x58] sm:$0xff]
        %v196 = vld [vmem:[%s0 + $0x60] sm:$0xff]
        %v197 = vld [vmem:[%s0 + $0x68] sm:$0xff]
        %v198 = vld [vmem:[%s0 + $0x70] sm:$0xff]
        %v199 = vld [vmem:[%s0 + $0x78] sm:$0xff]
        %v200 = vld [vmem:[%s0 + $0x80] sm:$0xff]
        %v201 = vld [vmem:[%s0 + $0x88] sm:$0xff]
        %v202 = vld [vmem:[%s0 + $0x90] sm:$0xff]
        %v203 = vld [vmem:[%s0 + $0x98] sm:$0xff]
        %v204 = vld [vmem:[%s0 + $0xa0] sm:$0xff]
        %v205 = vld [vmem:[%s0 + $0xa8] sm:$0xff]
        %v206 = vld [vmem:[%s0 + $0xb0] sm:$0xff]
        %v207 = vld [vmem:[%s0 + $0xb8] sm:$0xff]
        %v208 = vld [vmem:[%s0 + $0xc0] sm:$0xff]
        %v209 = vld [vmem:[%s0 + $0xc8] sm:$0xff]
        %v210 = vld [vmem:[%s0 + $0xd0] sm:$0xff]
        %v211 = vld [vmem:[%s0 + $0xd8] sm:$0xff]
        %v212 = vld [vmem:[%s0 + $0xe0] sm:$0xff]
        %v213 = vld [vmem:[%s0 + $0xe8] sm:$0xff]
        %v214 = vld [vmem:[%s0 + $0xf0] sm:$0xff]
        %v215 = vld [vmem:[%s0 + $0xf8] sm:$0xff]
        %v216 = vld [vmem:[%s0 + $0x100] sm:$0xff]
        %v217 = vld [vmem:[%s0 + $0x108] sm:$0xff]
        %v218 = vld [vmem:[%s0 + $0x110] sm:$0xff]
        %v219 = vld [vmem:[%s0 + $0x118] sm:$0xff]
        %v220 = vld [vmem:[%s0 + $0x120] sm:$0xff]
        %v221 = vld [vmem:[%s0 + $0x128] sm:$0xff]
        %v222 = vld [vmem:[%s0 + $0x130] sm:$0xff]
        %v223 = vld [vmem:[%s0 + $0x138] sm:$0xff]
        %v224 = vld [vmem:[%s0 + $0x140] sm:$0xff]
        %v225 = vld [vmem:[%s0 + $0x148] sm:$0xff]
        %v226 = vld [vmem:[%s0 + $0x150] sm:$0xff]
        %v227 = vld [vmem:[%s0 + $0x158] sm:$0xff]
        %v228 = vld [vmem:[%s0 + $0x160] sm:$0xff]
        %v229 = vld [vmem:[%s0 + $0x168] sm:$0xff]
        %v230 = vld [vmem:[%s0 + $0x170] sm:$0xff]
        %v231 = vld [vmem:[%s0 + $0x178] sm:$0xff]
        %v232 = vld [vmem:[%s0 + $0x180] sm:$0xff]
        %v233 = vld [vmem:[%s0 + $0x188] sm:$0xff]
        %v234 = vld [vmem:[%s0 + $0x190] sm:$0xff]
        %v235 = vld [vmem:[%s0 + $0x198] sm:$0xff]
        %v236 = vld [vmem:[%s0 + $0x1a0] sm:$0xff]
        %v237 = vld [vmem:[%s0 + $0x1a8] sm:$0xff]
        %v238 = vld [vmem:[%s0 + $0x1b0] sm:$0xff]
        %v239 = vld [vmem:[%s0 + $0x1b8] sm:$0xff]
        %v240 = vld [vmem:[%s0 + $0x1c0] sm:$0xff]
        %v241 = vld [vmem:[%s0 + $0x1c8] sm:$0xff]
        %v242 = vld [vmem:[%s0 + $0x1d0] sm:$0xff]
        %v243 = vld [vmem:[%s0 + $0x1d8] sm:$0xff]
        %v244 = vld [vmem:[%s0 + $0x1e0] sm:$0xff]
        %v245 = vld [vmem:[%s0 + $0x1e8] sm:$0xff]
        %v246 = vld [vmem:[%s0 + $0x1f0] sm:$0xff]
        %v247 = vld [vmem:[%s0 + $0x1f8] sm:$0xff]
        %v248 = vld [vmem:[%s180] sm:$0x1f]
        %vm249 = vcmask 39936
        %v251 = vsel %vm249, %v184, 0
        %v254 = vsel %vm249, %v185, 0
        %v257 = vsel %vm249, %v186, 0
        %v260 = vsel %vm249, %v187, 0
        %v263 = vsel %vm249, %v188, 0
        %v266 = vsel %vm249, %v189, 0
        %v269 = vsel %vm249, %v190, 0
        %v272 = vsel %vm249, %v191, 0
        %v275 = vsel %vm249, %v192, 0
        %v278 = vsel %vm249, %v193, 0
        %v281 = vsel %vm249, %v194, 0
        %v284 = vsel %vm249, %v195, 0
        %v287 = vsel %vm249, %v196, 0
        %v290 = vsel %vm249, %v197, 0
        %v293 = vsel %vm249, %v198, 0
        %v296 = vsel %vm249, %v199, 0
        %v299 = vsel %vm249, %v200, 0
        %v302 = vsel %vm249, %v201, 0
        %v305 = vsel %vm249, %v202, 0
        %v308 = vsel %vm249, %v203, 0
        %v311 = vsel %vm249, %v204, 0
        %v314 = vsel %vm249, %v205, 0
        %v317 = vsel %vm249, %v206, 0
        %v320 = vsel %vm249, %v207, 0
        %v323 = vsel %vm249, %v208, 0
        %v326 = vsel %vm249, %v209, 0
        %v329 = vsel %vm249, %v210, 0
        %v332 = vsel %vm249, %v211, 0
        %v335 = vsel %vm249, %v212, 0
        %v338 = vsel %vm249, %v213, 0
        %v341 = vsel %vm249, %v214, 0
        %v344 = vsel %vm249, %v215, 0
        %v347 = vsel %vm249, %v216, 0
        %v350 = vsel %vm249, %v217, 0
        %v353 = vsel %vm249, %v218, 0
        %v356 = vsel %vm249, %v219, 0
        %v359 = vsel %vm249, %v220, 0
        %v362 = vsel %vm249, %v221, 0
        %v365 = vsel %vm249, %v222, 0
        %v368 = vsel %vm249, %v223, 0
        %v371 = vsel %vm249, %v224, 0
        %v374 = vsel %vm249, %v225, 0
        %v377 = vsel %vm249, %v226, 0
        %v380 = vsel %vm249, %v227, 0
        %v383 = vsel %vm249, %v228, 0
        %v386 = vsel %vm249, %v229, 0
        %v389 = vsel %vm249, %v230, 0
        %v392 = vsel %vm249, %v231, 0
        %v395 = vsel %vm249, %v232, 0
        %v398 = vsel %vm249, %v233, 0
        %v401 = vsel %vm249, %v234, 0
        %v404 = vsel %vm249, %v235, 0
        %v407 = vsel %vm249, %v236, 0
        %v410 = vsel %vm249, %v237, 0
        %v413 = vsel %vm249, %v238, 0
        %v416 = vsel %vm249, %v239, 0
        %v419 = vsel %vm249, %v240, 0
        %v422 = vsel %vm249, %v241, 0
        %v425 = vsel %vm249, %v242, 0
        %v428 = vsel %vm249, %v243, 0
        %v431 = vsel %vm249, %v244, 0
        %v434 = vsel %vm249, %v245, 0
        %v437 = vsel %vm249, %v246, 0
        %v440 = vsel %vm249, %v247, 0
        %vm442 = vcmask 1044480
        %v444 = vsel %vm442, %v248, 0
        %446 = vmatprep.subr.mxu0 0.0
        %447 = vmatpush1.msra.mxu0 %v444
        %448 = vmatprep.subr.mxu0 0.0
        %449 = vmatpush1.msra.mxu0 0.0
        %450 = vmatprep.subr.mxu0 0.0
        %451 = vmatpush1.msra.mxu0 0.0
        %452 = vmatprep.subr.mxu0 0.0
        %453 = vmatpush1.msra.mxu0 0.0
        %454 = vmatprep.subr.mxu0 0.0
        %455 = vmatpush1.msra.mxu0 0.0
        %456 = vmatprep.subr.mxu0 0.0
        %457 = vmatpush1.msra.mxu0 0.0
        %458 = vmatprep.subr.mxu0 0.0
        %459 = vmatpush1.msra.mxu0 0.0
        %460 = vmatprep.subr.mxu0 0.0
        %461 = vmatpush1.msra.mxu0 0.0
        %462 = vmatprep.subr.mxu0 0.0
        %463 = vmatpush1.msra.mxu0 0.0
        %464 = vmatprep.subr.mxu0 0.0
        %465 = vmatpush1.msra.mxu0 0.0
        %466 = vmatprep.subr.mxu0 0.0
        %467 = vmatpush1.msra.mxu0 0.0
        %468 = vmatprep.subr.mxu0 0.0
        %469 = vmatpush1.msra.mxu0 0.0
        %470 = vmatprep.subr.mxu0 0.0
        %471 = vmatpush1.msra.mxu0 0.0
        %472 = vmatprep.subr.mxu0 0.0
        %473 = vmatpush1.msra.mxu0 0.0
        %474 = vmatprep.subr.mxu0 0.0
        %475 = vmatpush1.msra.mxu0 0.0
        %476 = vmatprep.subr.mxu0 0.0
        %477 = vmatpush1.msra.mxu0 0.0
        %478 = vmatprep.subr.mxu0 0.0
        %479 = vmatpush1.msra.mxu0 0.0
        %480 = vmatprep.subr.mxu0 0.0
        %481 = vmatpush1.msra.mxu0 0.0
        %482 = vmatprep.subr.mxu0 0.0
        %483 = vmatpush1.msra.mxu0 0.0
        %484 = vmatprep.subr.mxu0 0.0
        %485 = vmatpush1.msra.mxu0 0.0
        %486 = vmatprep.subr.mxu0 0.0
        %487 = vmatpush1.msra.mxu0 0.0
        %488 = vmatprep.subr.mxu0 0.0
        %489 = vmatpush1.msra.mxu0 0.0
        %490 = vmatprep.subr.mxu0 0.0
        %491 = vmatpush1.msra.mxu0 0.0
        %492 = vmatprep.subr.mxu0 0.0
        %493 = vmatpush1.msra.mxu0 0.0
        %494 = vmatprep.subr.mxu0 0.0
        %495 = vmatpush1.msra.mxu0 0.0
        %496 = vmatprep.subr.mxu0 0.0
        %497 = vmatpush1.msra.mxu0 0.0
        %498 = vmatprep.subr.mxu0 0.0
        %499 = vmatpush1.msra.mxu0 0.0
        %500 = vmatprep.subr.mxu0 0.0
        %501 = vmatpush1.msra.mxu0 0.0
        %502 = vmatprep.subr.mxu0 0.0
        %503 = vmatpush1.msra.mxu0 0.0
        %504 = vmatprep.subr.mxu0 0.0
        %505 = vmatpush1.msra.mxu0 0.0
        %506 = vmatprep.subr.mxu0 0.0
        %507 = vmatpush1.msra.mxu0 0.0
        %508 = vmatprep.subr.mxu0 0.0
        %509 = vmatpush1.msra.mxu0 0.0
        %510 = vmatprep.mubr.f32.mxu0 0.0
        %511 = vmatmul.mubr.f32.gmra.mrb[0].mxu0 %v251
        %v512 = vpop.f32.mrb[0].mxu0
        %v513 = vadd.f32 0.0, %v512
        %v514 = vpop.f32.mrb[0].mxu0
        %515 = vmatprep.mubr.f32.mxu0 0.0
        %516 = vmatmul.mubr.f32.gmra.mrb[0].mxu0 %v254
        %v517 = vpop.f32.mrb[0].mxu0
        %v518 = vadd.f32 0.0, %v517
        %v519 = vpop.f32.mrb[0].mxu0
        %520 = vmatprep.mubr.f32.mxu0 0.0
        %521 = vmatmul.mubr.f32.gmra.mrb[0].mxu0 %v257
        %v522 = vpop.f32.mrb[0].mxu0
        %v523 = vadd.f32 0.0, %v522
        %v524 = vpop.f32.mrb[0].mxu0
        %525 = vmatprep.mubr.f32.mxu0 0.0
        %526 = vmatmul.mubr.f32.gmra.mrb[0].mxu0 %v260
        %v527 = vpop.f32.mrb[0].mxu0
        %v528 = vadd.f32 0.0, %v527
        %v529 = vpop.f32.mrb[0].mxu0
        %530 = vmatprep.mubr.f32.mxu0 0.0
        %531 = vmatmul.mubr.f32.gmra.mrb[0].mxu0 %v263
        %v532 = vpop.f32.mrb[0].mxu0
        %v533 = vadd.f32 0.0, %v532
        %v534 = vpop.f32.mrb[0].mxu0
        %535 = vmatprep.mubr.f32.mxu0 0.0
        %536 = vmatmul.mubr.f32.gmra.mrb[0].mxu0 %v266
        %v537 = vpop.f32.mrb[0].mxu0
        %v538 = vadd.f32 0.0, %v537
        %v539 = vpop.f32.mrb[0].mxu0
        %540 = vmatprep.mubr.f32.mxu0 0.0
        %541 = vmatmul.mubr.f32.gmra.mrb[0].mxu0 %v269
        %v542 = vpop.f32.mrb[0].mxu0
        %v543 = vadd.f32 0.0, %v542
        %v544 = vpop.f32.mrb[0].mxu0
        %545 = vmatprep.mubr.f32.mxu0 0.0
        %546 = vmatmul.mubr.f32.gmra.mrb[0].mxu0 %v272
        %v547 = vpop.f32.mrb[0].mxu0
        %v548 = vadd.f32 0.0, %v547
        %v549 = vpop.f32.mrb[0].mxu0
        %550 = vmatprep.mubr.f32.mxu0 0.0
        %551 = vmatmul.mubr.f32.gmra.mrb[0].mxu0 %v275
        %v552 = vpop.f32.mrb[0].mxu0
        %v553 = vadd.f32 0.0, %v552
        %v554 = vpop.f32.mrb[0].mxu0
        %555 = vmatprep.mubr.f32.mxu0 0.0
        %556 = vmatmul.mubr.f32.gmra.mrb[0].mxu0 %v278
        %v557 = vpop.f32.mrb[0].mxu0
        %v558 = vadd.f32 0.0, %v557
        %v559 = vpop.f32.mrb[0].mxu0
        %560 = vmatprep.mubr.f32.mxu0 0.0
        %561 = vmatmul.mubr.f32.gmra.mrb[0].mxu0 %v281
        %v562 = vpop.f32.mrb[0].mxu0
        %v563 = vadd.f32 0.0, %v562
        %v564 = vpop.f32.mrb[0].mxu0
        %565 = vmatprep.mubr.f32.mxu0 0.0
        %566 = vmatmul.mubr.f32.gmra.mrb[0].mxu0 %v284
        %v567 = vpop.f32.mrb[0].mxu0
        %v568 = vadd.f32 0.0, %v567
        %v569 = vpop.f32.mrb[0].mxu0
        %570 = vmatprep.mubr.f32.mxu0 0.0
        %571 = vmatmul.mubr.f32.gmra.mrb[0].mxu0 %v287
        %v572 = vpop.f32.mrb[0].mxu0
        %v573 = vadd.f32 0.0, %v572
        %v574 = vpop.f32.mrb[0].mxu0
        %575 = vmatprep.mubr.f32.mxu0 0.0
        %576 = vmatmul.mubr.f32.gmra.mrb[0].mxu0 %v290
        %v577 = vpop.f32.mrb[0].mxu0
        %v578 = vadd.f32 0.0, %v577
        %v579 = vpop.f32.mrb[0].mxu0
        %580 = vmatprep.mubr.f32.mxu0 0.0
        %581 = vmatmul.mubr.f32.gmra.mrb[0].mxu0 %v293
        %v582 = vpop.f32.mrb[0].mxu0
        %v583 = vadd.f32 0.0, %v582
        %v584 = vpop.f32.mrb[0].mxu0
        %585 = vmatprep.mubr.f32.mxu0 0.0
        %586 = vmatmul.mubr.f32.gmra.mrb[0].mxu0 %v296
        %v587 = vpop.f32.mrb[0].mxu0
        %v588 = vadd.f32 0.0, %v587
        %v589 = vpop.f32.mrb[0].mxu0
        %590 = vmatprep.mubr.f32.mxu0 0.0
        %591 = vmatmul.mubr.f32.gmra.mrb[0].mxu0 %v299
        %v592 = vpop.f32.mrb[0].mxu0
        %v593 = vadd.f32 0.0, %v592
        %v594 = vpop.f32.mrb[0].mxu0
        %595 = vmatprep.mubr.f32.mxu0 0.0
        %596 = vmatmul.mubr.f32.gmra.mrb[0].mxu0 %v302
        %v597 = vpop.f32.mrb[0].mxu0
        %v598 = vadd.f32 0.0, %v597
        %v599 = vpop.f32.mrb[0].mxu0
        %600 = vmatprep.mubr.f32.mxu0 0.0
        %601 = vmatmul.mubr.f32.gmra.mrb[0].mxu0 %v305
        %v602 = vpop.f32.mrb[0].mxu0
        %v603 = vadd.f32 0.0, %v602
        %v604 = vpop.f32.mrb[0].mxu0
        %605 = vmatprep.mubr.f32.mxu0 0.0
        %606 = vmatmul.mubr.f32.gmra.mrb[0].mxu0 %v308
        %v607 = vpop.f32.mrb[0].mxu0
        %v608 = vadd.f32 0.0, %v607
        %v609 = vpop.f32.mrb[0].mxu0
        %610 = vmatprep.mubr.f32.mxu0 0.0
        %611 = vmatmul.mubr.f32.gmra.mrb[0].mxu0 %v311
        %v612 = vpop.f32.mrb[0].mxu0
        %v613 = vadd.f32 0.0, %v612
        %v614 = vpop.f32.mrb[0].mxu0
        %615 = vmatprep.mubr.f32.mxu0 0.0
        %616 = vmatmul.mubr.f32.gmra.mrb[0].mxu0 %v314
        %v617 = vpop.f32.mrb[0].mxu0
        %v618 = vadd.f32 0.0, %v617
        %v619 = vpop.f32.mrb[0].mxu0
        %620 = vmatprep.mubr.f32.mxu0 0.0
        %621 = vmatmul.mubr.f32.gmra.mrb[0].mxu0 %v317
        %v622 = vpop.f32.mrb[0].mxu0
        %v623 = vadd.f32 0.0, %v622
        %v624 = vpop.f32.mrb[0].mxu0
        %625 = vmatprep.mubr.f32.mxu0 0.0
        %626 = vmatmul.mubr.f32.gmra.mrb[0].mxu0 %v320
        %v627 = vpop.f32.mrb[0].mxu0
        %v628 = vadd.f32 0.0, %v627
        %v629 = vpop.f32.mrb[0].mxu0
        %630 = vmatprep.mubr.f32.mxu0 0.0
        %631 = vmatmul.mubr.f32.gmra.mrb[0].mxu0 %v323
        %v632 = vpop.f32.mrb[0].mxu0
        %v633 = vadd.f32 0.0, %v632
        %v634 = vpop.f32.mrb[0].mxu0
        %635 = vmatprep.mubr.f32.mxu0 0.0
        %636 = vmatmul.mubr.f32.gmra.mrb[0].mxu0 %v326
        %v637 = vpop.f32.mrb[0].mxu0
        %v638 = vadd.f32 0.0, %v637
        %v639 = vpop.f32.mrb[0].mxu0
        %640 = vmatprep.mubr.f32.mxu0 0.0
        %641 = vmatmul.mubr.f32.gmra.mrb[0].mxu0 %v329
        %v642 = vpop.f32.mrb[0].mxu0
        %v643 = vadd.f32 0.0, %v642
        %v644 = vpop.f32.mrb[0].mxu0
        %645 = vmatprep.mubr.f32.mxu0 0.0
        %646 = vmatmul.mubr.f32.gmra.mrb[0].mxu0 %v332
        %v647 = vpop.f32.mrb[0].mxu0
        %v648 = vadd.f32 0.0, %v647
        %v649 = vpop.f32.mrb[0].mxu0
        %650 = vmatprep.mubr.f32.mxu0 0.0
        %651 = vmatmul.mubr.f32.gmra.mrb[0].mxu0 %v335
        %v652 = vpop.f32.mrb[0].mxu0
        %v653 = vadd.f32 0.0, %v652
        %v654 = vpop.f32.mrb[0].mxu0
        %655 = vmatprep.mubr.f32.mxu0 0.0
        %656 = vmatmul.mubr.f32.gmra.mrb[0].mxu0 %v338
        %v657 = vpop.f32.mrb[0].mxu0
        %v658 = vadd.f32 0.0, %v657
        %v659 = vpop.f32.mrb[0].mxu0
        %660 = vmatprep.mubr.f32.mxu0 0.0
        %661 = vmatmul.mubr.f32.gmra.mrb[0].mxu0 %v341
        %v662 = vpop.f32.mrb[0].mxu0
        %v663 = vadd.f32 0.0, %v662
        %v664 = vpop.f32.mrb[0].mxu0
        %665 = vmatprep.mubr.f32.mxu0 0.0
        %666 = vmatmul.mubr.f32.gmra.mrb[0].mxu0 %v344
        %v667 = vpop.f32.mrb[0].mxu0
        %v668 = vadd.f32 0.0, %v667
        %v669 = vpop.f32.mrb[0].mxu0
        %670 = vmatprep.mubr.f32.mxu0 0.0
        %671 = vmatmul.mubr.f32.gmra.mrb[0].mxu0 %v347
        %v672 = vpop.f32.mrb[0].mxu0
        %v673 = vadd.f32 0.0, %v672
        %v674 = vpop.f32.mrb[0].mxu0
        %675 = vmatprep.mubr.f32.mxu0 0.0
        %676 = vmatmul.mubr.f32.gmra.mrb[0].mxu0 %v350
        %v677 = vpop.f32.mrb[0].mxu0
        %v678 = vadd.f32 0.0, %v677
        %v679 = vpop.f32.mrb[0].mxu0
        %680 = vmatprep.mubr.f32.mxu0 0.0
        %681 = vmatmul.mubr.f32.gmra.mrb[0].mxu0 %v353
        %v682 = vpop.f32.mrb[0].mxu0
        %v683 = vadd.f32 0.0, %v682
        %v684 = vpop.f32.mrb[0].mxu0
        %685 = vmatprep.mubr.f32.mxu0 0.0
        %686 = vmatmul.mubr.f32.gmra.mrb[0].mxu0 %v356
        %v687 = vpop.f32.mrb[0].mxu0
        %v688 = vadd.f32 0.0, %v687
        %v689 = vpop.f32.mrb[0].mxu0
        %690 = vmatprep.mubr.f32.mxu0 0.0
        %691 = vmatmul.mubr.f32.gmra.mrb[0].mxu0 %v359
        %v692 = vpop.f32.mrb[0].mxu0
        %v693 = vadd.f32 0.0, %v692
        %v694 = vpop.f32.mrb[0].mxu0
        %695 = vmatprep.mubr.f32.mxu0 0.0
        %696 = vmatmul.mubr.f32.gmra.mrb[0].mxu0 %v362
        %v697 = vpop.f32.mrb[0].mxu0
        %v698 = vadd.f32 0.0, %v697
        %v699 = vpop.f32.mrb[0].mxu0
        %700 = vmatprep.mubr.f32.mxu0 0.0
        %701 = vmatmul.mubr.f32.gmra.mrb[0].mxu0 %v365
        %v702 = vpop.f32.mrb[0].mxu0
        %v703 = vadd.f32 0.0, %v702
        %v704 = vpop.f32.mrb[0].mxu0
        %705 = vmatprep.mubr.f32.mxu0 0.0
        %706 = vmatmul.mubr.f32.gmra.mrb[0].mxu0 %v368
        %v707 = vpop.f32.mrb[0].mxu0
        %v708 = vadd.f32 0.0, %v707
        %v709 = vpop.f32.mrb[0].mxu0
        %710 = vmatprep.mubr.f32.mxu0 0.0
        %711 = vmatmul.mubr.f32.gmra.mrb[0].mxu0 %v371
        %v712 = vpop.f32.mrb[0].mxu0
        %v713 = vadd.f32 0.0, %v712
        %v714 = vpop.f32.mrb[0].mxu0
        %715 = vmatprep.mubr.f32.mxu0 0.0
        %716 = vmatmul.mubr.f32.gmra.mrb[0].mxu0 %v374
        %v717 = vpop.f32.mrb[0].mxu0
        %v718 = vadd.f32 0.0, %v717
        %v719 = vpop.f32.mrb[0].mxu0
        %720 = vmatprep.mubr.f32.mxu0 0.0
        %721 = vmatmul.mubr.f32.gmra.mrb[0].mxu0 %v377
        %v722 = vpop.f32.mrb[0].mxu0
        %v723 = vadd.f32 0.0, %v722
        %v724 = vpop.f32.mrb[0].mxu0
        %725 = vmatprep.mubr.f32.mxu0 0.0
        %726 = vmatmul.mubr.f32.gmra.mrb[0].mxu0 %v380
        %v727 = vpop.f32.mrb[0].mxu0
        %v728 = vadd.f32 0.0, %v727
        %v729 = vpop.f32.mrb[0].mxu0
        %730 = vmatprep.mubr.f32.mxu0 0.0
        %731 = vmatmul.mubr.f32.gmra.mrb[0].mxu0 %v383
        %v732 = vpop.f32.mrb[0].mxu0
        %v733 = vadd.f32 0.0, %v732
        %v734 = vpop.f32.mrb[0].mxu0
        %735 = vmatprep.mubr.f32.mxu0 0.0
        %736 = vmatmul.mubr.f32.gmra.mrb[0].mxu0 %v386
        %v737 = vpop.f32.mrb[0].mxu0
        %v738 = vadd.f32 0.0, %v737
        %v739 = vpop.f32.mrb[0].mxu0
        %740 = vmatprep.mubr.f32.mxu0 0.0
        %741 = vmatmul.mubr.f32.gmra.mrb[0].mxu0 %v389
        %v742 = vpop.f32.mrb[0].mxu0
        %v743 = vadd.f32 0.0, %v742
        %v744 = vpop.f32.mrb[0].mxu0
        %745 = vmatprep.mubr.f32.mxu0 0.0
        %746 = vmatmul.mubr.f32.gmra.mrb[0].mxu0 %v392
        %v747 = vpop.f32.mrb[0].mxu0
        %v748 = vadd.f32 0.0, %v747
        %v749 = vpop.f32.mrb[0].mxu0
        %750 = vmatprep.mubr.f32.mxu0 0.0
        %751 = vmatmul.mubr.f32.gmra.mrb[0].mxu0 %v395
        %v752 = vpop.f32.mrb[0].mxu0
        %v753 = vadd.f32 0.0, %v752
        %v754 = vpop.f32.mrb[0].mxu0
        %755 = vmatprep.mubr.f32.mxu0 0.0
        %756 = vmatmul.mubr.f32.gmra.mrb[0].mxu0 %v398
        %v757 = vpop.f32.mrb[0].mxu0
        %v758 = vadd.f32 0.0, %v757
        %v759 = vpop.f32.mrb[0].mxu0
        %760 = vmatprep.mubr.f32.mxu0 0.0
        %761 = vmatmul.mubr.f32.gmra.mrb[0].mxu0 %v401
        %v762 = vpop.f32.mrb[0].mxu0
        %v763 = vadd.f32 0.0, %v762
        %v764 = vpop.f32.mrb[0].mxu0
        %765 = vmatprep.mubr.f32.mxu0 0.0
        %766 = vmatmul.mubr.f32.gmra.mrb[0].mxu0 %v404
        %v767 = vpop.f32.mrb[0].mxu0
        %v768 = vadd.f32 0.0, %v767
        %v769 = vpop.f32.mrb[0].mxu0
        %770 = vmatprep.mubr.f32.mxu0 0.0
        %771 = vmatmul.mubr.f32.gmra.mrb[0].mxu0 %v407
        %v772 = vpop.f32.mrb[0].mxu0
        %v773 = vadd.f32 0.0, %v772
        %v774 = vpop.f32.mrb[0].mxu0
        %775 = vmatprep.mubr.f32.mxu0 0.0
        %776 = vmatmul.mubr.f32.gmra.mrb[0].mxu0 %v410
        %v777 = vpop.f32.mrb[0].mxu0
        %v778 = vadd.f32 0.0, %v777
        %v779 = vpop.f32.mrb[0].mxu0
        %780 = vmatprep.mubr.f32.mxu0 0.0
        %781 = vmatmul.mubr.f32.gmra.mrb[0].mxu0 %v413
        %v782 = vpop.f32.mrb[0].mxu0
        %v783 = vadd.f32 0.0, %v782
        %v784 = vpop.f32.mrb[0].mxu0
        %785 = vmatprep.mubr.f32.mxu0 0.0
        %786 = vmatmul.mubr.f32.gmra.mrb[0].mxu0 %v416
        %v787 = vpop.f32.mrb[0].mxu0
        %v788 = vadd.f32 0.0, %v787
        %v789 = vpop.f32.mrb[0].mxu0
        %790 = vmatprep.mubr.f32.mxu0 0.0
        %791 = vmatmul.mubr.f32.gmra.mrb[0].mxu0 %v419
        %v792 = vpop.f32.mrb[0].mxu0
        %v793 = vadd.f32 0.0, %v792
        %v794 = vpop.f32.mrb[0].mxu0
        %795 = vmatprep.mubr.f32.mxu0 0.0
        %796 = vmatmul.mubr.f32.gmra.mrb[0].mxu0 %v422
        %v797 = vpop.f32.mrb[0].mxu0
        %v798 = vadd.f32 0.0, %v797
        %v799 = vpop.f32.mrb[0].mxu0
        %800 = vmatprep.mubr.f32.mxu0 0.0
        %801 = vmatmul.mubr.f32.gmra.mrb[0].mxu0 %v425
        %v802 = vpop.f32.mrb[0].mxu0
        %v803 = vadd.f32 0.0, %v802
        %v804 = vpop.f32.mrb[0].mxu0
        %805 = vmatprep.mubr.f32.mxu0 0.0
        %806 = vmatmul.mubr.f32.gmra.mrb[0].mxu0 %v428
        %v807 = vpop.f32.mrb[0].mxu0
        %v808 = vadd.f32 0.0, %v807
        %v809 = vpop.f32.mrb[0].mxu0
        %810 = vmatprep.mubr.f32.mxu0 0.0
        %811 = vmatmul.mubr.f32.gmra.mrb[0].mxu0 %v431
        %v812 = vpop.f32.mrb[0].mxu0
        %v813 = vadd.f32 0.0, %v812
        %v814 = vpop.f32.mrb[0].mxu0
        %815 = vmatprep.mubr.f32.mxu0 0.0
        %816 = vmatmul.mubr.f32.gmra.mrb[0].mxu0 %v434
        %v817 = vpop.f32.mrb[0].mxu0
        %v818 = vadd.f32 0.0, %v817
        %v819 = vpop.f32.mrb[0].mxu0
        %820 = vmatprep.mubr.f32.mxu0 0.0
        %821 = vmatmul.mubr.f32.gmra.mrb[0].mxu0 %v437
        %v822 = vpop.f32.mrb[0].mxu0
        %v823 = vadd.f32 0.0, %v822
        %v824 = vpop.f32.mrb[0].mxu0
        %825 = vmatprep.mubr.f32.mxu0 0.0
        %826 = vmatmul.mubr.f32.gmra.mrb[0].mxu0 %v440
        %v827 = vpop.f32.mrb[0].mxu0
        %v828 = vadd.f32 0.0, %v827
        %v829 = vpop.f32.mrb[0].mxu0
        %830 = vdwg.mxu0
        %831 = vst [vmem:[%s168] sm:$0xff] %v513
        %832 = vst [vmem:[%s168 + $0x8] sm:$0xff] %v518
        %833 = vst [vmem:[%s168 + $0x10] sm:$0xff] %v523
        %834 = vst [vmem:[%s168 + $0x18] sm:$0xff] %v528
        %835 = vst [vmem:[%s168 + $0x20] sm:$0xff] %v533
        %836 = vst [vmem:[%s168 + $0x28] sm:$0xff] %v538
        %837 = vst [vmem:[%s168 + $0x30] sm:$0xff] %v543
        %838 = vst [vmem:[%s168 + $0x38] sm:$0xff] %v548
        %839 = vst [vmem:[%s168 + $0x40] sm:$0xff] %v553
        %840 = vst [vmem:[%s168 + $0x48] sm:$0xff] %v558
        %841 = vst [vmem:[%s168 + $0x50] sm:$0xff] %v563
        %842 = vst [vmem:[%s168 + $0x58] sm:$0xff] %v568
        %843 = vst [vmem:[%s168 + $0x60] sm:$0xff] %v573
        %844 = vst [vmem:[%s168 + $0x68] sm:$0xff] %v578
        %845 = vst [vmem:[%s168 + $0x70] sm:$0xff] %v583
        %846 = vst [vmem:[%s168 + $0x78] sm:$0xff] %v588
        %847 = vst [vmem:[%s168 + $0x80] sm:$0xff] %v593
        %848 = vst [vmem:[%s168 + $0x88] sm:$0xff] %v598
        %849 = vst [vmem:[%s168 + $0x90] sm:$0xff] %v603
        %850 = vst [vmem:[%s168 + $0x98] sm:$0xff] %v608
        %851 = vst [vmem:[%s168 + $0xa0] sm:$0xff] %v613
        %852 = vst [vmem:[%s168 + $0xa8] sm:$0xff] %v618
        %853 = vst [vmem:[%s168 + $0xb0] sm:$0xff] %v623
        %854 = vst [vmem:[%s168 + $0xb8] sm:$0xff] %v628
        %855 = vst [vmem:[%s168 + $0xc0] sm:$0xff] %v633
        %856 = vst [vmem:[%s168 + $0xc8] sm:$0xff] %v638
        %857 = vst [vmem:[%s168 + $0xd0] sm:$0xff] %v643
        %858 = vst [vmem:[%s168 + $0xd8] sm:$0xff] %v648
        %859 = vst [vmem:[%s168 + $0xe0] sm:$0xff] %v653
        %860 = vst [vmem:[%s168 + $0xe8] sm:$0xff] %v658
        %861 = vst [vmem:[%s168 + $0xf0] sm:$0xff] %v663
        %862 = vst [vmem:[%s168 + $0xf8] sm:$0xff] %v668
        %863 = vst [vmem:[%s175] sm:$0xff] %v673
        %864 = vst [vmem:[%s175 + $0x8] sm:$0xff] %v678
        %865 = vst [vmem:[%s175 + $0x10] sm:$0xff] %v683
        %866 = vst [vmem:[%s175 + $0x18] sm:$0xff] %v688
        %867 = vst [vmem:[%s175 + $0x20] sm:$0xff] %v693
        %868 = vst [vmem:[%s175 + $0x28] sm:$0xff] %v698
        %869 = vst [vmem:[%s175 + $0x30] sm:$0xff] %v703
        %870 = vst [vmem:[%s175 + $0x38] sm:$0xff] %v708
        %871 = vst [vmem:[%s175 + $0x40] sm:$0xff] %v713
        %872 = vst [vmem:[%s175 + $0x48] sm:$0xff] %v718
        %873 = vst [vmem:[%s175 + $0x50] sm:$0xff] %v723
        %874 = vst [vmem:[%s175 + $0x58] sm:$0xff] %v728
        %875 = vst [vmem:[%s175 + $0x60] sm:$0xff] %v733
        %876 = vst [vmem:[%s175 + $0x68] sm:$0xff] %v738
        %877 = vst [vmem:[%s175 + $0x70] sm:$0xff] %v743
        %878 = vst [vmem:[%s175 + $0x78] sm:$0xff] %v748
        %879 = vst [vmem:[%s175 + $0x80] sm:$0xff] %v753
        %880 = vst [vmem:[%s175 + $0x88] sm:$0xff] %v758
        %881 = vst [vmem:[%s175 + $0x90] sm:$0xff] %v763
        %882 = vst [vmem:[%s175 + $0x98] sm:$0xff] %v768
        %883 = vst [vmem:[%s175 + $0xa0] sm:$0xff] %v773
        %884 = vst [vmem:[%s175 + $0xa8] sm:$0xff] %v778
        %885 = vst [vmem:[%s175 + $0xb0] sm:$0xff] %v783
        %886 = vst [vmem:[%s175 + $0xb8] sm:$0xff] %v788
        %887 = vst [vmem:[%s175 + $0xc0] sm:$0xff] %v793
        %888 = vst [vmem:[%s175 + $0xc8] sm:$0xff] %v798
        %889 = vst [vmem:[%s175 + $0xd0] sm:$0xff] %v803
        %890 = vst [vmem:[%s175 + $0xd8] sm:$0xff] %v808
        %891 = vst [vmem:[%s175 + $0xe0] sm:$0xff] %v813
        %892 = vst [vmem:[%s175 + $0xe8] sm:$0xff] %v818
        %893 = vst [vmem:[%s175 + $0xf0] sm:$0xff] %v823
        %894 = vst [vmem:[%s175 + $0xf8] sm:$0xff] %v828
        %s895 = scalar_lea.vmem %s180, 8
        %v896 = vld [vmem:[%s895] sm:$0x1f]
        %v898 = vsel %vm442, %v896, 0
        %900 = vmatprep.subr.mxu0 0.0
        %901 = vmatpush1.msra.mxu0 %v898
        %902 = vmatprep.subr.mxu0 0.0
        %903 = vmatpush1.msra.mxu0 0.0
        %904 = vmatprep.subr.mxu0 0.0
        %905 = vmatpush1.msra.mxu0 0.0
        %906 = vmatprep.subr.mxu0 0.0
        %907 = vmatpush1.msra.mxu0 0.0
        %908 = vmatprep.subr.mxu0 0.0
        %909 = vmatpush1.msra.mxu0 0.0
        %910 = vmatprep.subr.mxu0 0.0
        %911 = vmatpush1.msra.mxu0 0.0
        %912 = vmatprep.subr.mxu0 0.0
        %913 = vmatpush1.msra.mxu0 0.0
        %914 = vmatprep.subr.mxu0 0.0
        %915 = vmatpush1.msra.mxu0 0.0
        %916 = vmatprep.subr.mxu0 0.0
        %917 = vmatpush1.msra.mxu0 0.0
        %918 = vmatprep.subr.mxu0 0.0
        %919 = vmatpush1.msra.mxu0 0.0
        %920 = vmatprep.subr.mxu0 0.0
        %921 = vmatpush1.msra.mxu0 0.0
        %922 = vmatprep.subr.mxu0 0.0
        %923 = vmatpush1.msra.mxu0 0.0
        %924 = vmatprep.subr.mxu0 0.0
        %925 = vmatpush1.msra.mxu0 0.0
        %926 = vmatprep.subr.mxu0 0.0
        %927 = vmatpush1.msra.mxu0 0.0
        %928 = vmatprep.subr.mxu0 0.0
        %929 = vmatpush1.msra.mxu0 0.0
        %930 = vmatprep.subr.mxu0 0.0
        %931 = vmatpush1.msra.mxu0 0.0
        %932 = vmatprep.subr.mxu0 0.0
        %933 = vmatpush1.msra.mxu0 0.0
        %934 = vmatprep.subr.mxu0 0.0
        %935 = vmatpush1.msra.mxu0 0.0
        %936 = vmatprep.subr.mxu0 0.0
        %937 = vmatpush1.msra.mxu0 0.0
        %938 = vmatprep.subr.mxu0 0.0
        %939 = vmatpush1.msra.mxu0 0.0
        %940 = vmatprep.subr.mxu0 0.0
        %941 = vmatpush1.msra.mxu0 0.0
        %942 = vmatprep.subr.mxu0 0.0
        %943 = vmatpush1.msra.mxu0 0.0
        %944 = vmatprep.subr.mxu0 0.0
        %945 = vmatpush1.msra.mxu0 0.0
        %946 = vmatprep.subr.mxu0 0.0
        %947 = vmatpush1.msra.mxu0 0.0
        %948 = vmatprep.subr.mxu0 0.0
        %949 = vmatpush1.msra.mxu0 0.0
        %950 = vmatprep.subr.mxu0 0.0
        %951 = vmatpush1.msra.mxu0 0.0
        %952 = vmatprep.subr.mxu0 0.0
        %953 = vmatpush1.msra.mxu0 0.0
        %954 = vmatprep.subr.mxu0 0.0
        %955 = vmatpush1.msra.mxu0 0.0
        %956 = vmatprep.subr.mxu0 0.0
        %957 = vmatpush1.msra.mxu0 0.0
        %958 = vmatprep.subr.mxu0 0.0
        %959 = vmatpush1.msra.mxu0 0.0
        %960 = vmatprep.subr.mxu0 0.0
        %961 = vmatpush1.msra.mxu0 0.0
        %962 = vmatprep.subr.mxu0 0.0
        %963 = vmatpush1.msra.mxu0 0.0
        %964 = vmatprep.mubr.f32.mxu0 0.0
        %965 = vmatmul.mubr.f32.gmra.mrb[0].mxu0 %v251
        %v966 = vpop.f32.mrb[0].mxu0
        %v967 = vadd.f32 0.0, %v966
        %v968 = vpop.f32.mrb[0].mxu0
        %969 = vmatprep.mubr.f32.mxu0 0.0
        %970 = vmatmul.mubr.f32.gmra.mrb[0].mxu0 %v254
        %v971 = vpop.f32.mrb[0].mxu0
        %v972 = vadd.f32 0.0, %v971
        %v973 = vpop.f32.mrb[0].mxu0
        %974 = vmatprep.mubr.f32.mxu0 0.0
        %975 = vmatmul.mubr.f32.gmra.mrb[0].mxu0 %v257
        %v976 = vpop.f32.mrb[0].mxu0
        %v977 = vadd.f32 0.0, %v976
        %v978 = vpop.f32.mrb[0].mxu0
        %979 = vmatprep.mubr.f32.mxu0 0.0
        %980 = vmatmul.mubr.f32.gmra.mrb[0].mxu0 %v260
        %v981 = vpop.f32.mrb[0].mxu0
        %v982 = vadd.f32 0.0, %v981
        %v983 = vpop.f32.mrb[0].mxu0
        %984 = vmatprep.mubr.f32.mxu0 0.0
        %985 = vmatmul.mubr.f32.gmra.mrb[0].mxu0 %v263
        %v986 = vpop.f32.mrb[0].mxu0
        %v987 = vadd.f32 0.0, %v986
        %v988 = vpop.f32.mrb[0].mxu0
        %989 = vmatprep.mubr.f32.mxu0 0.0
        %990 = vmatmul.mubr.f32.gmra.mrb[0].mxu0 %v266
        %v991 = vpop.f32.mrb[0].mxu0
        %v992 = vadd.f32 0.0, %v991
        %v993 = vpop.f32.mrb[0].mxu0
        %994 = vmatprep.mubr.f32.mxu0 0.0
        %995 = vmatmul.mubr.f32.gmra.mrb[0].mxu0 %v269
        %v996 = vpop.f32.mrb[0].mxu0
        %v997 = vadd.f32 0.0, %v996
        %v998 = vpop.f32.mrb[0].mxu0
        %999 = vmatprep.mubr.f32.mxu0 0.0
        %1000 = vmatmul.mubr.f32.gmra.mrb[0].mxu0 %v272
        %v1001 = vpop.f32.mrb[0].mxu0
        %v1002 = vadd.f32 0.0, %v1001
        %v1003 = vpop.f32.mrb[0].mxu0
        %1004 = vmatprep.mubr.f32.mxu0 0.0
        %1005 = vmatmul.mubr.f32.gmra.mrb[0].mxu0 %v275
        %v1006 = vpop.f32.mrb[0].mxu0
        %v1007 = vadd.f32 0.0, %v1006
        %v1008 = vpop.f32.mrb[0].mxu0
        %1009 = vmatprep.mubr.f32.mxu0 0.0
        %1010 = vmatmul.mubr.f32.gmra.mrb[0].mxu0 %v278
        %v1011 = vpop.f32.mrb[0].mxu0
        %v1012 = vadd.f32 0.0, %v1011
        %v1013 = vpop.f32.mrb[0].mxu0
        %1014 = vmatprep.mubr.f32.mxu0 0.0
        %1015 = vmatmul.mubr.f32.gmra.mrb[0].mxu0 %v281
        %v1016 = vpop.f32.mrb[0].mxu0
        %v1017 = vadd.f32 0.0, %v1016
        %v1018 = vpop.f32.mrb[0].mxu0
        %1019 = vmatprep.mubr.f32.mxu0 0.0
        %1020 = vmatmul.mubr.f32.gmra.mrb[0].mxu0 %v284
        %v1021 = vpop.f32.mrb[0].mxu0
        %v1022 = vadd.f32 0.0, %v1021
        %v1023 = vpop.f32.mrb[0].mxu0
        %1024 = vmatprep.mubr.f32.mxu0 0.0
        %1025 = vmatmul.mubr.f32.gmra.mrb[0].mxu0 %v287
        %v1026 = vpop.f32.mrb[0].mxu0
        %v1027 = vadd.f32 0.0, %v1026
        %v1028 = vpop.f32.mrb[0].mxu0
        %1029 = vmatprep.mubr.f32.mxu0 0.0
        %1030 = vmatmul.mubr.f32.gmra.mrb[0].mxu0 %v290
        %v1031 = vpop.f32.mrb[0].mxu0
        %v1032 = vadd.f32 0.0, %v1031
        %v1033 = vpop.f32.mrb[0].mxu0
        %1034 = vmatprep.mubr.f32.mxu0 0.0
        %1035 = vmatmul.mubr.f32.gmra.mrb[0].mxu0 %v293
        %v1036 = vpop.f32.mrb[0].mxu0
        %v1037 = vadd.f32 0.0, %v1036
        %v1038 = vpop.f32.mrb[0].mxu0
        %1039 = vmatprep.mubr.f32.mxu0 0.0
        %1040 = vmatmul.mubr.f32.gmra.mrb[0].mxu0 %v296
        %v1041 = vpop.f32.mrb[0].mxu0
        %v1042 = vadd.f32 0.0, %v1041
        %v1043 = vpop.f32.mrb[0].mxu0
        %1044 = vmatprep.mubr.f32.mxu0 0.0
        %1045 = vmatmul.mubr.f32.gmra.mrb[0].mxu0 %v299
        %v1046 = vpop.f32.mrb[0].mxu0
        %v1047 = vadd.f32 0.0, %v1046
        %v1048 = vpop.f32.mrb[0].mxu0
        %1049 = vmatprep.mubr.f32.mxu0 0.0
        %1050 = vmatmul.mubr.f32.gmra.mrb[0].mxu0 %v302
        %v1051 = vpop.f32.mrb[0].mxu0
        %v1052 = vadd.f32 0.0, %v1051
        %v1053 = vpop.f32.mrb[0].mxu0
        %1054 = vmatprep.mubr.f32.mxu0 0.0
        %1055 = vmatmul.mubr.f32.gmra.mrb[0].mxu0 %v305
        %v1056 = vpop.f32.mrb[0].mxu0
        %v1057 = vadd.f32 0.0, %v1056
        %v1058 = vpop.f32.mrb[0].mxu0
        %1059 = vmatprep.mubr.f32.mxu0 0.0
        %1060 = vmatmul.mubr.f32.gmra.mrb[0].mxu0 %v308
        %v1061 = vpop.f32.mrb[0].mxu0
        %v1062 = vadd.f32 0.0, %v1061
        %v1063 = vpop.f32.mrb[0].mxu0
        %1064 = vmatprep.mubr.f32.mxu0 0.0
        %1065 = vmatmul.mubr.f32.gmra.mrb[0].mxu0 %v311
        %v1066 = vpop.f32.mrb[0].mxu0
        %v1067 = vadd.f32 0.0, %v1066
        %v1068 = vpop.f32.mrb[0].mxu0
        %1069 = vmatprep.mubr.f32.mxu0 0.0
        %1070 = vmatmul.mubr.f32.gmra.mrb[0].mxu0 %v314
        %v1071 = vpop.f32.mrb[0].mxu0
        %v1072 = vadd.f32 0.0, %v1071
        %v1073 = vpop.f32.mrb[0].mxu0
        %1074 = vmatprep.mubr.f32.mxu0 0.0
        %1075 = vmatmul.mubr.f32.gmra.mrb[0].mxu0 %v317
        %v1076 = vpop.f32.mrb[0].mxu0
        %v1077 = vadd.f32 0.0, %v1076
        %v1078 = vpop.f32.mrb[0].mxu0
        %1079 = vmatprep.mubr.f32.mxu0 0.0
        %1080 = vmatmul.mubr.f32.gmra.mrb[0].mxu0 %v320
        %v1081 = vpop.f32.mrb[0].mxu0
        %v1082 = vadd.f32 0.0, %v1081
        %v1083 = vpop.f32.mrb[0].mxu0
        %1084 = vmatprep.mubr.f32.mxu0 0.0
        %1085 = vmatmul.mubr.f32.gmra.mrb[0].mxu0 %v323
        %v1086 = vpop.f32.mrb[0].mxu0
        %v1087 = vadd.f32 0.0, %v1086
        %v1088 = vpop.f32.mrb[0].mxu0
        %1089 = vmatprep.mubr.f32.mxu0 0.0
        %1090 = vmatmul.mubr.f32.gmra.mrb[0].mxu0 %v326
        %v1091 = vpop.f32.mrb[0].mxu0
        %v1092 = vadd.f32 0.0, %v1091
        %v1093 = vpop.f32.mrb[0].mxu0
        %1094 = vmatprep.mubr.f32.mxu0 0.0
        %1095 = vmatmul.mubr.f32.gmra.mrb[0].mxu0 %v329
        %v1096 = vpop.f32.mrb[0].mxu0
        %v1097 = vadd.f32 0.0, %v1096
        %v1098 = vpop.f32.mrb[0].mxu0
        %1099 = vmatprep.mubr.f32.mxu0 0.0
        %1100 = vmatmul.mubr.f32.gmra.mrb[0].mxu0 %v332
        %v1101 = vpop.f32.mrb[0].mxu0
        %v1102 = vadd.f32 0.0, %v1101
        %v1103 = vpop.f32.mrb[0].mxu0
        %1104 = vmatprep.mubr.f32.mxu0 0.0
        %1105 = vmatmul.mubr.f32.gmra.mrb[0].mxu0 %v335
        %v1106 = vpop.f32.mrb[0].mxu0
        %v1107 = vadd.f32 0.0, %v1106
        %v1108 = vpop.f32.mrb[0].mxu0
        %1109 = vmatprep.mubr.f32.mxu0 0.0
        %1110 = vmatmul.mubr.f32.gmra.mrb[0].mxu0 %v338
        %v1111 = vpop.f32.mrb[0].mxu0
        %v1112 = vadd.f32 0.0, %v1111
        %v1113 = vpop.f32.mrb[0].mxu0
        %1114 = vmatprep.mubr.f32.mxu0 0.0
        %1115 = vmatmul.mubr.f32.gmra.mrb[0].mxu0 %v341
        %v1116 = vpop.f32.mrb[0].mxu0
        %v1117 = vadd.f32 0.0, %v1116
        %v1118 = vpop.f32.mrb[0].mxu0
        %1119 = vmatprep.mubr.f32.mxu0 0.0
        %1120 = vmatmul.mubr.f32.gmra.mrb[0].mxu0 %v344
        %v1121 = vpop.f32.mrb[0].mxu0
        %v1122 = vadd.f32 0.0, %v1121
        %v1123 = vpop.f32.mrb[0].mxu0
        %1124 = vmatprep.mubr.f32.mxu0 0.0
        %1125 = vmatmul.mubr.f32.gmra.mrb[0].mxu0 %v347
        %v1126 = vpop.f32.mrb[0].mxu0
        %v1127 = vadd.f32 0.0, %v1126
        %v1128 = vpop.f32.mrb[0].mxu0
        %1129 = vmatprep.mubr.f32.mxu0 0.0
        %1130 = vmatmul.mubr.f32.gmra.mrb[0].mxu0 %v350
        %v1131 = vpop.f32.mrb[0].mxu0
        %v1132 = vadd.f32 0.0, %v1131
        %v1133 = vpop.f32.mrb[0].mxu0
        %1134 = vmatprep.mubr.f32.mxu0 0.0
        %1135 = vmatmul.mubr.f32.gmra.mrb[0].mxu0 %v353
        %v1136 = vpop.f32.mrb[0].mxu0
        %v1137 = vadd.f32 0.0, %v1136
        %v1138 = vpop.f32.mrb[0].mxu0
        %1139 = vmatprep.mubr.f32.mxu0 0.0
        %1140 = vmatmul.mubr.f32.gmra.mrb[0].mxu0 %v356
        %v1141 = vpop.f32.mrb[0].mxu0
        %v1142 = vadd.f32 0.0, %v1141
        %v1143 = vpop.f32.mrb[0].mxu0
        %1144 = vmatprep.mubr.f32.mxu0 0.0
        %1145 = vmatmul.mubr.f32.gmra.mrb[0].mxu0 %v359
        %v1146 = vpop.f32.mrb[0].mxu0
        %v1147 = vadd.f32 0.0, %v1146
        %v1148 = vpop.f32.mrb[0].mxu0
        %1149 = vmatprep.mubr.f32.mxu0 0.0
        %1150 = vmatmul.mubr.f32.gmra.mrb[0].mxu0 %v362
        %v1151 = vpop.f32.mrb[0].mxu0
        %v1152 = vadd.f32 0.0, %v1151
        %v1153 = vpop.f32.mrb[0].mxu0
        %1154 = vmatprep.mubr.f32.mxu0 0.0
        %1155 = vmatmul.mubr.f32.gmra.mrb[0].mxu0 %v365
        %v1156 = vpop.f32.mrb[0].mxu0
        %v1157 = vadd.f32 0.0, %v1156
        %v1158 = vpop.f32.mrb[0].mxu0
        %1159 = vmatprep.mubr.f32.mxu0 0.0
        %1160 = vmatmul.mubr.f32.gmra.mrb[0].mxu0 %v368
        %v1161 = vpop.f32.mrb[0].mxu0
        %v1162 = vadd.f32 0.0, %v1161
        %v1163 = vpop.f32.mrb[0].mxu0
        %1164 = vmatprep.mubr.f32.mxu0 0.0
        %1165 = vmatmul.mubr.f32.gmra.mrb[0].mxu0 %v371
        %v1166 = vpop.f32.mrb[0].mxu0
        %v1167 = vadd.f32 0.0, %v1166
        %v1168 = vpop.f32.mrb[0].mxu0
        %1169 = vmatprep.mubr.f32.mxu0 0.0
        %1170 = vmatmul.mubr.f32.gmra.mrb[0].mxu0 %v374
        %v1171 = vpop.f32.mrb[0].mxu0
        %v1172 = vadd.f32 0.0, %v1171
        %v1173 = vpop.f32.mrb[0].mxu0
        %1174 = vmatprep.mubr.f32.mxu0 0.0
        %1175 = vmatmul.mubr.f32.gmra.mrb[0].mxu0 %v377
        %v1176 = vpop.f32.mrb[0].mxu0
        %v1177 = vadd.f32 0.0, %v1176
        %v1178 = vpop.f32.mrb[0].mxu0
        %1179 = vmatprep.mubr.f32.mxu0 0.0
        %1180 = vmatmul.mubr.f32.gmra.mrb[0].mxu0 %v380
        %v1181 = vpop.f32.mrb[0].mxu0
        %v1182 = vadd.f32 0.0, %v1181
        %v1183 = vpop.f32.mrb[0].mxu0
        %1184 = vmatprep.mubr.f32.mxu0 0.0
        %1185 = vmatmul.mubr.f32.gmra.mrb[0].mxu0 %v383
        %v1186 = vpop.f32.mrb[0].mxu0
        %v1187 = vadd.f32 0.0, %v1186
        %v1188 = vpop.f32.mrb[0].mxu0
        %1189 = vmatprep.mubr.f32.mxu0 0.0
        %1190 = vmatmul.mubr.f32.gmra.mrb[0].mxu0 %v386
        %v1191 = vpop.f32.mrb[0].mxu0
        %v1192 = vadd.f32 0.0, %v1191
        %v1193 = vpop.f32.mrb[0].mxu0
        %1194 = vmatprep.mubr.f32.mxu0 0.0
        %1195 = vmatmul.mubr.f32.gmra.mrb[0].mxu0 %v389
        %v1196 = vpop.f32.mrb[0].mxu0
        %v1197 = vadd.f32 0.0, %v1196
        %v1198 = vpop.f32.mrb[0].mxu0
        %1199 = vmatprep.mubr.f32.mxu0 0.0
        %1200 = vmatmul.mubr.f32.gmra.mrb[0].mxu0 %v392
        %v1201 = vpop.f32.mrb[0].mxu0
        %v1202 = vadd.f32 0.0, %v1201
        %v1203 = vpop.f32.mrb[0].mxu0
        %1204 = vmatprep.mubr.f32.mxu0 0.0
        %1205 = vmatmul.mubr.f32.gmra.mrb[0].mxu0 %v395
        %v1206 = vpop.f32.mrb[0].mxu0
        %v1207 = vadd.f32 0.0, %v1206
        %v1208 = vpop.f32.mrb[0].mxu0
        %1209 = vmatprep.mubr.f32.mxu0 0.0
        %1210 = vmatmul.mubr.f32.gmra.mrb[0].mxu0 %v398
        %v1211 = vpop.f32.mrb[0].mxu0
        %v1212 = vadd.f32 0.0, %v1211
        %v1213 = vpop.f32.mrb[0].mxu0
        %1214 = vmatprep.mubr.f32.mxu0 0.0
        %1215 = vmatmul.mubr.f32.gmra.mrb[0].mxu0 %v401
        %v1216 = vpop.f32.mrb[0].mxu0
        %v1217 = vadd.f32 0.0, %v1216
        %v1218 = vpop.f32.mrb[0].mxu0
        %1219 = vmatprep.mubr.f32.mxu0 0.0
        %1220 = vmatmul.mubr.f32.gmra.mrb[0].mxu0 %v404
        %v1221 = vpop.f32.mrb[0].mxu0
        %v1222 = vadd.f32 0.0, %v1221
        %v1223 = vpop.f32.mrb[0].mxu0
        %1224 = vmatprep.mubr.f32.mxu0 0.0
        %1225 = vmatmul.mubr.f32.gmra.mrb[0].mxu0 %v407
        %v1226 = vpop.f32.mrb[0].mxu0
        %v1227 = vadd.f32 0.0, %v1226
        %v1228 = vpop.f32.mrb[0].mxu0
        %1229 = vmatprep.mubr.f32.mxu0 0.0
        %1230 = vmatmul.mubr.f32.gmra.mrb[0].mxu0 %v410
        %v1231 = vpop.f32.mrb[0].mxu0
        %v1232 = vadd.f32 0.0, %v1231
        %v1233 = vpop.f32.mrb[0].mxu0
        %1234 = vmatprep.mubr.f32.mxu0 0.0
        %1235 = vmatmul.mubr.f32.gmra.mrb[0].mxu0 %v413
        %v1236 = vpop.f32.mrb[0].mxu0
        %v1237 = vadd.f32 0.0, %v1236
        %v1238 = vpop.f32.mrb[0].mxu0
        %1239 = vmatprep.mubr.f32.mxu0 0.0
        %1240 = vmatmul.mubr.f32.gmra.mrb[0].mxu0 %v416
        %v1241 = vpop.f32.mrb[0].mxu0
        %v1242 = vadd.f32 0.0, %v1241
        %v1243 = vpop.f32.mrb[0].mxu0
        %1244 = vmatprep.mubr.f32.mxu0 0.0
        %1245 = vmatmul.mubr.f32.gmra.mrb[0].mxu0 %v419
        %v1246 = vpop.f32.mrb[0].mxu0
        %v1247 = vadd.f32 0.0, %v1246
        %v1248 = vpop.f32.mrb[0].mxu0
        %1249 = vmatprep.mubr.f32.mxu0 0.0
        %1250 = vmatmul.mubr.f32.gmra.mrb[0].mxu0 %v422
        %v1251 = vpop.f32.mrb[0].mxu0
        %v1252 = vadd.f32 0.0, %v1251
        %v1253 = vpop.f32.mrb[0].mxu0
        %1254 = vmatprep.mubr.f32.mxu0 0.0
        %1255 = vmatmul.mubr.f32.gmra.mrb[0].mxu0 %v425
        %v1256 = vpop.f32.mrb[0].mxu0
        %v1257 = vadd.f32 0.0, %v1256
        %v1258 = vpop.f32.mrb[0].mxu0
        %1259 = vmatprep.mubr.f32.mxu0 0.0
        %1260 = vmatmul.mubr.f32.gmra.mrb[0].mxu0 %v428
        %v1261 = vpop.f32.mrb[0].mxu0
        %v1262 = vadd.f32 0.0, %v1261
        %v1263 = vpop.f32.mrb[0].mxu0
        %1264 = vmatprep.mubr.f32.mxu0 0.0
        %1265 = vmatmul.mubr.f32.gmra.mrb[0].mxu0 %v431
        %v1266 = vpop.f32.mrb[0].mxu0
        %v1267 = vadd.f32 0.0, %v1266
        %v1268 = vpop.f32.mrb[0].mxu0
        %1269 = vmatprep.mubr.f32.mxu0 0.0
        %1270 = vmatmul.mubr.f32.gmra.mrb[0].mxu0 %v434
        %v1271 = vpop.f32.mrb[0].mxu0
        %v1272 = vadd.f32 0.0, %v1271
        %v1273 = vpop.f32.mrb[0].mxu0
        %1274 = vmatprep.mubr.f32.mxu0 0.0
        %1275 = vmatmul.mubr.f32.gmra.mrb[0].mxu0 %v437
        %v1276 = vpop.f32.mrb[0].mxu0
        %v1277 = vadd.f32 0.0, %v1276
        %v1278 = vpop.f32.mrb[0].mxu0
        %1279 = vmatprep.mubr.f32.mxu0 0.0
        %1280 = vmatmul.mubr.f32.gmra.mrb[0].mxu0 %v440
        %v1281 = vpop.f32.mrb[0].mxu0
        %v1282 = vadd.f32 0.0, %v1281
        %v1283 = vpop.f32.mrb[0].mxu0
        %1284 = vdwg.mxu0
        %s1285 = scalar_lea.vmem %s168, 256 [#allocation2]
        %1286 = vst [vmem:[%s1285] sm:$0xff] %v967
        %1287 = vst [vmem:[%s1285 + $0x8] sm:$0xff] %v972
        %1288 = vst [vmem:[%s1285 + $0x10] sm:$0xff] %v977
        %1289 = vst [vmem:[%s1285 + $0x18] sm:$0xff] %v982
        %1290 = vst [vmem:[%s1285 + $0x20] sm:$0xff] %v987
        %1291 = vst [vmem:[%s1285 + $0x28] sm:$0xff] %v992
        %1292 = vst [vmem:[%s1285 + $0x30] sm:$0xff] %v997
        %1293 = vst [vmem:[%s1285 + $0x38] sm:$0xff] %v1002
        %1294 = vst [vmem:[%s1285 + $0x40] sm:$0xff] %v1007
        %1295 = vst [vmem:[%s1285 + $0x48] sm:$0xff] %v1012
        %1296 = vst [vmem:[%s1285 + $0x50] sm:$0xff] %v1017
        %1297 = vst [vmem:[%s1285 + $0x58] sm:$0xff] %v1022
        %1298 = vst [vmem:[%s1285 + $0x60] sm:$0xff] %v1027
        %1299 = vst [vmem:[%s1285 + $0x68] sm:$0xff] %v1032
        %1300 = vst [vmem:[%s1285 + $0x70] sm:$0xff] %v1037
        %1301 = vst [vmem:[%s1285 + $0x78] sm:$0xff] %v1042
        %1302 = vst [vmem:[%s1285 + $0x80] sm:$0xff] %v1047
        %1303 = vst [vmem:[%s1285 + $0x88] sm:$0xff] %v1052
        %1304 = vst [vmem:[%s1285 + $0x90] sm:$0xff] %v1057
        %1305 = vst [vmem:[%s1285 + $0x98] sm:$0xff] %v1062
        %1306 = vst [vmem:[%s1285 + $0xa0] sm:$0xff] %v1067
        %1307 = vst [vmem:[%s1285 + $0xa8] sm:$0xff] %v1072
        %1308 = vst [vmem:[%s1285 + $0xb0] sm:$0xff] %v1077
        %1309 = vst [vmem:[%s1285 + $0xb8] sm:$0xff] %v1082
        %1310 = vst [vmem:[%s1285 + $0xc0] sm:$0xff] %v1087
        %1311 = vst [vmem:[%s1285 + $0xc8] sm:$0xff] %v1092
        %1312 = vst [vmem:[%s1285 + $0xd0] sm:$0xff] %v1097
        %1313 = vst [vmem:[%s1285 + $0xd8] sm:$0xff] %v1102
        %1314 = vst [vmem:[%s1285 + $0xe0] sm:$0xff] %v1107
        %1315 = vst [vmem:[%s1285 + $0xe8] sm:$0xff] %v1112
        %1316 = vst [vmem:[%s1285 + $0xf0] sm:$0xff] %v1117
        %1317 = vst [vmem:[%s1285 + $0xf8] sm:$0xff] %v1122
        %s1318 = scalar_lea.vmem %s175, 256 [#allocation4]
        %1319 = vst [vmem:[%s1318] sm:$0xff] %v1127
        %1320 = vst [vmem:[%s1318 + $0x8] sm:$0xff] %v1132
        %1321 = vst [vmem:[%s1318 + $0x10] sm:$0xff] %v1137
        %1322 = vst [vmem:[%s1318 + $0x18] sm:$0xff] %v1142
        %1323 = vst [vmem:[%s1318 + $0x20] sm:$0xff] %v1147
        %1324 = vst [vmem:[%s1318 + $0x28] sm:$0xff] %v1152
        %1325 = vst [vmem:[%s1318 + $0x30] sm:$0xff] %v1157
        %1326 = vst [vmem:[%s1318 + $0x38] sm:$0xff] %v1162
        %1327 = vst [vmem:[%s1318 + $0x40] sm:$0xff] %v1167
        %1328 = vst [vmem:[%s1318 + $0x48] sm:$0xff] %v1172
        %1329 = vst [vmem:[%s1318 + $0x50] sm:$0xff] %v1177
        %1330 = vst [vmem:[%s1318 + $0x58] sm:$0xff] %v1182
        %1331 = vst [vmem:[%s1318 + $0x60] sm:$0xff] %v1187
        %1332 = vst [vmem:[%s1318 + $0x68] sm:$0xff] %v1192
        %1333 = vst [vmem:[%s1318 + $0x70] sm:$0xff] %v1197
        %1334 = vst [vmem:[%s1318 + $0x78] sm:$0xff] %v1202
        %1335 = vst [vmem:[%s1318 + $0x80] sm:$0xff] %v1207
        %1336 = vst [vmem:[%s1318 + $0x88] sm:$0xff] %v1212
        %1337 = vst [vmem:[%s1318 + $0x90] sm:$0xff] %v1217
        %1338 = vst [vmem:[%s1318 + $0x98] sm:$0xff] %v1222
        %1339 = vst [vmem:[%s1318 + $0xa0] sm:$0xff] %v1227
        %1340 = vst [vmem:[%s1318 + $0xa8] sm:$0xff] %v1232
        %1341 = vst [vmem:[%s1318 + $0xb0] sm:$0xff] %v1237
        %1342 = vst [vmem:[%s1318 + $0xb8] sm:$0xff] %v1242
        %1343 = vst [vmem:[%s1318 + $0xc0] sm:$0xff] %v1247
        %1344 = vst [vmem:[%s1318 + $0xc8] sm:$0xff] %v1252
        %1345 = vst [vmem:[%s1318 + $0xd0] sm:$0xff] %v1257
        %1346 = vst [vmem:[%s1318 + $0xd8] sm:$0xff] %v1262
        %1347 = vst [vmem:[%s1318 + $0xe0] sm:$0xff] %v1267
        %1348 = vst [vmem:[%s1318 + $0xe8] sm:$0xff] %v1272
        %1349 = vst [vmem:[%s1318 + $0xf0] sm:$0xff] %v1277
        %1350 = vst [vmem:[%s1318 + $0xf8] sm:$0xff] %v1282
        %s1351 = scalar_lea.vmem %s180, 16
        %v1352 = vld [vmem:[%s1351] sm:$0x1f]
        %v1354 = vsel %vm442, %v1352, 0
        %1356 = vmatprep.subr.mxu0 0.0
        %1357 = vmatpush1.msra.mxu0 %v1354
        %1358 = vmatprep.subr.mxu0 0.0
        %1359 = vmatpush1.msra.mxu0 0.0
        %1360 = vmatprep.subr.mxu0 0.0
        %1361 = vmatpush1.msra.mxu0 0.0
        %1362 = vmatprep.subr.mxu0 0.0
        %1363 = vmatpush1.msra.mxu0 0.0
        %1364 = vmatprep.subr.mxu0 0.0
        %1365 = vmatpush1.msra.mxu0 0.0
        %1366 = vmatprep.subr.mxu0 0.0
        %1367 = vmatpush1.msra.mxu0 0.0
        %1368 = vmatprep.subr.mxu0 0.0
        %1369 = vmatpush1.msra.mxu0 0.0
        %1370 = vmatprep.subr.mxu0 0.0
        %1371 = vmatpush1.msra.mxu0 0.0
        %1372 = vmatprep.subr.mxu0 0.0
        %1373 = vmatpush1.msra.mxu0 0.0
        %1374 = vmatprep.subr.mxu0 0.0
        %1375 = vmatpush1.msra.mxu0 0.0
        %1376 = vmatprep.subr.mxu0 0.0
        %1377 = vmatpush1.msra.mxu0 0.0
        %1378 = vmatprep.subr.mxu0 0.0
        %1379 = vmatpush1.msra.mxu0 0.0
        %1380 = vmatprep.subr.mxu0 0.0
        %1381 = vmatpush1.msra.mxu0 0.0
        %1382 = vmatprep.subr.mxu0 0.0
        %1383 = vmatpush1.msra.mxu0 0.0
        %1384 = vmatprep.subr.mxu0 0.0
        %1385 = vmatpush1.msra.mxu0 0.0
        %1386 = vmatprep.subr.mxu0 0.0
        %1387 = vmatpush1.msra.mxu0 0.0
        %1388 = vmatprep.subr.mxu0 0.0
        %1389 = vmatpush1.msra.mxu0 0.0
        %1390 = vmatprep.subr.mxu0 0.0
        %1391 = vmatpush1.msra.mxu0 0.0
        %1392 = vmatprep.subr.mxu0 0.0
        %1393 = vmatpush1.msra.mxu0 0.0
        %1394 = vmatprep.subr.mxu0 0.0
        %1395 = vmatpush1.msra.mxu0 0.0
        %1396 = vmatprep.subr.mxu0 0.0
        %1397 = vmatpush1.msra.mxu0 0.0
        %1398 = vmatprep.subr.mxu0 0.0
        %1399 = vmatpush1.msra.mxu0 0.0
        %1400 = vmatprep.subr.mxu0 0.0
        %1401 = vmatpush1.msra.mxu0 0.0
        %1402 = vmatprep.subr.mxu0 0.0
        %1403 = vmatpush1.msra.mxu0 0.0
        %1404 = vmatprep.subr.mxu0 0.0
        %1405 = vmatpush1.msra.mxu0 0.0
        %1406 = vmatprep.subr.mxu0 0.0
        %1407 = vmatpush1.msra.mxu0 0.0
        %1408 = vmatprep.subr.mxu0 0.0
        %1409 = vmatpush1.msra.mxu0 0.0
        %1410 = vmatprep.subr.mxu0 0.0
        %1411 = vmatpush1.msra.mxu0 0.0
        %1412 = vmatprep.subr.mxu0 0.0
        %1413 = vmatpush1.msra.mxu0 0.0
        %1414 = vmatprep.subr.mxu0 0.0
        %1415 = vmatpush1.msra.mxu0 0.0
        %1416 = vmatprep.subr.mxu0 0.0
        %1417 = vmatpush1.msra.mxu0 0.0
        %1418 = vmatprep.subr.mxu0 0.0
        %1419 = vmatpush1.msra.mxu0 0.0
        %1420 = vmatprep.mubr.f32.mxu0 0.0
        %1421 = vmatmul.mubr.f32.gmra.mrb[0].mxu0 %v251
        %v1422 = vpop.f32.mrb[0].mxu0
        %v1423 = vadd.f32 0.0, %v1422
        %v1424 = vpop.f32.mrb[0].mxu0
        %1425 = vmatprep.mubr.f32.mxu0 0.0
        %1426 = vmatmul.mubr.f32.gmra.mrb[0].mxu0 %v254
        %v1427 = vpop.f32.mrb[0].mxu0
        %v1428 = vadd.f32 0.0, %v1427
        %v1429 = vpop.f32.mrb[0].mxu0
        %1430 = vmatprep.mubr.f32.mxu0 0.0
        %1431 = vmatmul.mubr.f32.gmra.mrb[0].mxu0 %v257
        %v1432 = vpop.f32.mrb[0].mxu0
        %v1433 = vadd.f32 0.0, %v1432
        %v1434 = vpop.f32.mrb[0].mxu0
        %1435 = vmatprep.mubr.f32.mxu0 0.0
        %1436 = vmatmul.mubr.f32.gmra.mrb[0].mxu0 %v260
        %v1437 = vpop.f32.mrb[0].mxu0
        %v1438 = vadd.f32 0.0, %v1437
        %v1439 = vpop.f32.mrb[0].mxu0
        %1440 = vmatprep.mubr.f32.mxu0 0.0
        %1441 = vmatmul.mubr.f32.gmra.mrb[0].mxu0 %v263
        %v1442 = vpop.f32.mrb[0].mxu0
        %v1443 = vadd.f32 0.0, %v1442
        %v1444 = vpop.f32.mrb[0].mxu0
        %1445 = vmatprep.mubr.f32.mxu0 0.0
        %1446 = vmatmul.mubr.f32.gmra.mrb[0].mxu0 %v266
        %v1447 = vpop.f32.mrb[0].mxu0
        %v1448 = vadd.f32 0.0, %v1447
        %v1449 = vpop.f32.mrb[0].mxu0
        %1450 = vmatprep.mubr.f32.mxu0 0.0
        %1451 = vmatmul.mubr.f32.gmra.mrb[0].mxu0 %v269
        %v1452 = vpop.f32.mrb[0].mxu0
        %v1453 = vadd.f32 0.0, %v1452
        %v1454 = vpop.f32.mrb[0].mxu0
        %1455 = vmatprep.mubr.f32.mxu0 0.0
        %1456 = vmatmul.mubr.f32.gmra.mrb[0].mxu0 %v272
        %v1457 = vpop.f32.mrb[0].mxu0
        %v1458 = vadd.f32 0.0, %v1457
        %v1459 = vpop.f32.mrb[0].mxu0
        %1460 = vmatprep.mubr.f32.mxu0 0.0
        %1461 = vmatmul.mubr.f32.gmra.mrb[0].mxu0 %v275
        %v1462 = vpop.f32.mrb[0].mxu0
        %v1463 = vadd.f32 0.0, %v1462
        %v1464 = vpop.f32.mrb[0].mxu0
        %1465 = vmatprep.mubr.f32.mxu0 0.0
        %1466 = vmatmul.mubr.f32.gmra.mrb[0].mxu0 %v278
        %v1467 = vpop.f32.mrb[0].mxu0
        %v1468 = vadd.f32 0.0, %v1467
        %v1469 = vpop.f32.mrb[0].mxu0
        %1470 = vmatprep.mubr.f32.mxu0 0.0
        %1471 = vmatmul.mubr.f32.gmra.mrb[0].mxu0 %v281
        %v1472 = vpop.f32.mrb[0].mxu0
        %v1473 = vadd.f32 0.0, %v1472
        %v1474 = vpop.f32.mrb[0].mxu0
        %1475 = vmatprep.mubr.f32.mxu0 0.0
        %1476 = vmatmul.mubr.f32.gmra.mrb[0].mxu0 %v284
        %v1477 = vpop.f32.mrb[0].mxu0
        %v1478 = vadd.f32 0.0, %v1477
        %v1479 = vpop.f32.mrb[0].mxu0
        %1480 = vmatprep.mubr.f32.mxu0 0.0
        %1481 = vmatmul.mubr.f32.gmra.mrb[0].mxu0 %v287
        %v1482 = vpop.f32.mrb[0].mxu0
        %v1483 = vadd.f32 0.0, %v1482
        %v1484 = vpop.f32.mrb[0].mxu0
        %1485 = vmatprep.mubr.f32.mxu0 0.0
        %1486 = vmatmul.mubr.f32.gmra.mrb[0].mxu0 %v290
        %v1487 = vpop.f32.mrb[0].mxu0
        %v1488 = vadd.f32 0.0, %v1487
        %v1489 = vpop.f32.mrb[0].mxu0
        %1490 = vmatprep.mubr.f32.mxu0 0.0
        %1491 = vmatmul.mubr.f32.gmra.mrb[0].mxu0 %v293
        %v1492 = vpop.f32.mrb[0].mxu0
        %v1493 = vadd.f32 0.0, %v1492
        %v1494 = vpop.f32.mrb[0].mxu0
        %1495 = vmatprep.mubr.f32.mxu0 0.0
        %1496 = vmatmul.mubr.f32.gmra.mrb[0].mxu0 %v296
        %v1497 = vpop.f32.mrb[0].mxu0
        %v1498 = vadd.f32 0.0, %v1497
        %v1499 = vpop.f32.mrb[0].mxu0
        %1500 = vmatprep.mubr.f32.mxu0 0.0
        %1501 = vmatmul.mubr.f32.gmra.mrb[0].mxu0 %v299
        %v1502 = vpop.f32.mrb[0].mxu0
        %v1503 = vadd.f32 0.0, %v1502
        %v1504 = vpop.f32.mrb[0].mxu0
        %1505 = vmatprep.mubr.f32.mxu0 0.0
        %1506 = vmatmul.mubr.f32.gmra.mrb[0].mxu0 %v302
        %v1507 = vpop.f32.mrb[0].mxu0
        %v1508 = vadd.f32 0.0, %v1507
        %v1509 = vpop.f32.mrb[0].mxu0
        %1510 = vmatprep.mubr.f32.mxu0 0.0
        %1511 = vmatmul.mubr.f32.gmra.mrb[0].mxu0 %v305
        %v1512 = vpop.f32.mrb[0].mxu0
        %v1513 = vadd.f32 0.0, %v1512
        %v1514 = vpop.f32.mrb[0].mxu0
        %1515 = vmatprep.mubr.f32.mxu0 0.0
        %1516 = vmatmul.mubr.f32.gmra.mrb[0].mxu0 %v308
        %v1517 = vpop.f32.mrb[0].mxu0
        %v1518 = vadd.f32 0.0, %v1517
        %v1519 = vpop.f32.mrb[0].mxu0
        %1520 = vmatprep.mubr.f32.mxu0 0.0
        %1521 = vmatmul.mubr.f32.gmra.mrb[0].mxu0 %v311
        %v1522 = vpop.f32.mrb[0].mxu0
        %v1523 = vadd.f32 0.0, %v1522
        %v1524 = vpop.f32.mrb[0].mxu0
        %1525 = vmatprep.mubr.f32.mxu0 0.0
        %1526 = vmatmul.mubr.f32.gmra.mrb[0].mxu0 %v314
        %v1527 = vpop.f32.mrb[0].mxu0
        %v1528 = vadd.f32 0.0, %v1527
        %v1529 = vpop.f32.mrb[0].mxu0
        %1530 = vmatprep.mubr.f32.mxu0 0.0
        %1531 = vmatmul.mubr.f32.gmra.mrb[0].mxu0 %v317
        %v1532 = vpop.f32.mrb[0].mxu0
        %v1533 = vadd.f32 0.0, %v1532
        %v1534 = vpop.f32.mrb[0].mxu0
        %1535 = vmatprep.mubr.f32.mxu0 0.0
        %1536 = vmatmul.mubr.f32.gmra.mrb[0].mxu0 %v320
        %v1537 = vpop.f32.mrb[0].mxu0
        %v1538 = vadd.f32 0.0, %v1537
        %v1539 = vpop.f32.mrb[0].mxu0
        %1540 = vmatprep.mubr.f32.mxu0 0.0
        %1541 = vmatmul.mubr.f32.gmra.mrb[0].mxu0 %v323
        %v1542 = vpop.f32.mrb[0].mxu0
        %v1543 = vadd.f32 0.0, %v1542
        %v1544 = vpop.f32.mrb[0].mxu0
        %1545 = vmatprep.mubr.f32.mxu0 0.0
        %1546 = vmatmul.mubr.f32.gmra.mrb[0].mxu0 %v326
        %v1547 = vpop.f32.mrb[0].mxu0
        %v1548 = vadd.f32 0.0, %v1547
        %v1549 = vpop.f32.mrb[0].mxu0
        %1550 = vmatprep.mubr.f32.mxu0 0.0
        %1551 = vmatmul.mubr.f32.gmra.mrb[0].mxu0 %v329
        %v1552 = vpop.f32.mrb[0].mxu0
        %v1553 = vadd.f32 0.0, %v1552
        %v1554 = vpop.f32.mrb[0].mxu0
        %1555 = vmatprep.mubr.f32.mxu0 0.0
        %1556 = vmatmul.mubr.f32.gmra.mrb[0].mxu0 %v332
        %v1557 = vpop.f32.mrb[0].mxu0
        %v1558 = vadd.f32 0.0, %v1557
        %v1559 = vpop.f32.mrb[0].mxu0
        %1560 = vmatprep.mubr.f32.mxu0 0.0
        %1561 = vmatmul.mubr.f32.gmra.mrb[0].mxu0 %v335
        %v1562 = vpop.f32.mrb[0].mxu0
        %v1563 = vadd.f32 0.0, %v1562
        %v1564 = vpop.f32.mrb[0].mxu0
        %1565 = vmatprep.mubr.f32.mxu0 0.0
        %1566 = vmatmul.mubr.f32.gmra.mrb[0].mxu0 %v338
        %v1567 = vpop.f32.mrb[0].mxu0
        %v1568 = vadd.f32 0.0, %v1567
        %v1569 = vpop.f32.mrb[0].mxu0
        %1570 = vmatprep.mubr.f32.mxu0 0.0
        %1571 = vmatmul.mubr.f32.gmra.mrb[0].mxu0 %v341
        %v1572 = vpop.f32.mrb[0].mxu0
        %v1573 = vadd.f32 0.0, %v1572
        %v1574 = vpop.f32.mrb[0].mxu0
        %1575 = vmatprep.mubr.f32.mxu0 0.0
        %1576 = vmatmul.mubr.f32.gmra.mrb[0].mxu0 %v344
        %v1577 = vpop.f32.mrb[0].mxu0
        %v1578 = vadd.f32 0.0, %v1577
        %v1579 = vpop.f32.mrb[0].mxu0
        %1580 = vmatprep.mubr.f32.mxu0 0.0
        %1581 = vmatmul.mubr.f32.gmra.mrb[0].mxu0 %v347
        %v1582 = vpop.f32.mrb[0].mxu0
        %v1583 = vadd.f32 0.0, %v1582
        %v1584 = vpop.f32.mrb[0].mxu0
        %1585 = vmatprep.mubr.f32.mxu0 0.0
        %1586 = vmatmul.mubr.f32.gmra.mrb[0].mxu0 %v350
        %v1587 = vpop.f32.mrb[0].mxu0
        %v1588 = vadd.f32 0.0, %v1587
        %v1589 = vpop.f32.mrb[0].mxu0
        %1590 = vmatprep.mubr.f32.mxu0 0.0
        %1591 = vmatmul.mubr.f32.gmra.mrb[0].mxu0 %v353
        %v1592 = vpop.f32.mrb[0].mxu0
        %v1593 = vadd.f32 0.0, %v1592
        %v1594 = vpop.f32.mrb[0].mxu0
        %1595 = vmatprep.mubr.f32.mxu0 0.0
        %1596 = vmatmul.mubr.f32.gmra.mrb[0].mxu0 %v356
        %v1597 = vpop.f32.mrb[0].mxu0
        %v1598 = vadd.f32 0.0, %v1597
        %v1599 = vpop.f32.mrb[0].mxu0
        %1600 = vmatprep.mubr.f32.mxu0 0.0
        %1601 = vmatmul.mubr.f32.gmra.mrb[0].mxu0 %v359
        %v1602 = vpop.f32.mrb[0].mxu0
        %v1603 = vadd.f32 0.0, %v1602
        %v1604 = vpop.f32.mrb[0].mxu0
        %1605 = vmatprep.mubr.f32.mxu0 0.0
        %1606 = vmatmul.mubr.f32.gmra.mrb[0].mxu0 %v362
        %v1607 = vpop.f32.mrb[0].mxu0
        %v1608 = vadd.f32 0.0, %v1607
        %v1609 = vpop.f32.mrb[0].mxu0
        %1610 = vmatprep.mubr.f32.mxu0 0.0
        %1611 = vmatmul.mubr.f32.gmra.mrb[0].mxu0 %v365
        %v1612 = vpop.f32.mrb[0].mxu0
        %v1613 = vadd.f32 0.0, %v1612
        %v1614 = vpop.f32.mrb[0].mxu0
        %1615 = vmatprep.mubr.f32.mxu0 0.0
        %1616 = vmatmul.mubr.f32.gmra.mrb[0].mxu0 %v368
        %v1617 = vpop.f32.mrb[0].mxu0
        %v1618 = vadd.f32 0.0, %v1617
        %v1619 = vpop.f32.mrb[0].mxu0
        %1620 = vmatprep.mubr.f32.mxu0 0.0
        %1621 = vmatmul.mubr.f32.gmra.mrb[0].mxu0 %v371
        %v1622 = vpop.f32.mrb[0].mxu0
        %v1623 = vadd.f32 0.0, %v1622
        %v1624 = vpop.f32.mrb[0].mxu0
        %1625 = vmatprep.mubr.f32.mxu0 0.0
        %1626 = vmatmul.mubr.f32.gmra.mrb[0].mxu0 %v374
        %v1627 = vpop.f32.mrb[0].mxu0
        %v1628 = vadd.f32 0.0, %v1627
        %v1629 = vpop.f32.mrb[0].mxu0
        %1630 = vmatprep.mubr.f32.mxu0 0.0
        %1631 = vmatmul.mubr.f32.gmra.mrb[0].mxu0 %v377
        %v1632 = vpop.f32.mrb[0].mxu0
        %v1633 = vadd.f32 0.0, %v1632
        %v1634 = vpop.f32.mrb[0].mxu0
        %1635 = vmatprep.mubr.f32.mxu0 0.0
        %1636 = vmatmul.mubr.f32.gmra.mrb[0].mxu0 %v380
        %v1637 = vpop.f32.mrb[0].mxu0
        %v1638 = vadd.f32 0.0, %v1637
        %v1639 = vpop.f32.mrb[0].mxu0
        %1640 = vmatprep.mubr.f32.mxu0 0.0
        %1641 = vmatmul.mubr.f32.gmra.mrb[0].mxu0 %v383
        %v1642 = vpop.f32.mrb[0].mxu0
        %v1643 = vadd.f32 0.0, %v1642
        %v1644 = vpop.f32.mrb[0].mxu0
        %1645 = vmatprep.mubr.f32.mxu0 0.0
        %1646 = vmatmul.mubr.f32.gmra.mrb[0].mxu0 %v386
        %v1647 = vpop.f32.mrb[0].mxu0
        %v1648 = vadd.f32 0.0, %v1647
        %v1649 = vpop.f32.mrb[0].mxu0
        %1650 = vmatprep.mubr.f32.mxu0 0.0
        %1651 = vmatmul.mubr.f32.gmra.mrb[0].mxu0 %v389
        %v1652 = vpop.f32.mrb[0].mxu0
        %v1653 = vadd.f32 0.0, %v1652
        %v1654 = vpop.f32.mrb[0].mxu0
        %1655 = vmatprep.mubr.f32.mxu0 0.0
        %1656 = vmatmul.mubr.f32.gmra.mrb[0].mxu0 %v392
        %v1657 = vpop.f32.mrb[0].mxu0
        %v1658 = vadd.f32 0.0, %v1657
        %v1659 = vpop.f32.mrb[0].mxu0
        %1660 = vmatprep.mubr.f32.mxu0 0.0
        %1661 = vmatmul.mubr.f32.gmra.mrb[0].mxu0 %v395
        %v1662 = vpop.f32.mrb[0].mxu0
        %v1663 = vadd.f32 0.0, %v1662
        %v1664 = vpop.f32.mrb[0].mxu0
        %1665 = vmatprep.mubr.f32.mxu0 0.0
        %1666 = vmatmul.mubr.f32.gmra.mrb[0].mxu0 %v398
        %v1667 = vpop.f32.mrb[0].mxu0
        %v1668 = vadd.f32 0.0, %v1667
        %v1669 = vpop.f32.mrb[0].mxu0
        %1670 = vmatprep.mubr.f32.mxu0 0.0
        %1671 = vmatmul.mubr.f32.gmra.mrb[0].mxu0 %v401
        %v1672 = vpop.f32.mrb[0].mxu0
        %v1673 = vadd.f32 0.0, %v1672
        %v1674 = vpop.f32.mrb[0].mxu0
        %1675 = vmatprep.mubr.f32.mxu0 0.0
        %1676 = vmatmul.mubr.f32.gmra.mrb[0].mxu0 %v404
        %v1677 = vpop.f32.mrb[0].mxu0
        %v1678 = vadd.f32 0.0, %v1677
        %v1679 = vpop.f32.mrb[0].mxu0
        %1680 = vmatprep.mubr.f32.mxu0 0.0
        %1681 = vmatmul.mubr.f32.gmra.mrb[0].mxu0 %v407
        %v1682 = vpop.f32.mrb[0].mxu0
        %v1683 = vadd.f32 0.0, %v1682
        %v1684 = vpop.f32.mrb[0].mxu0
        %1685 = vmatprep.mubr.f32.mxu0 0.0
        %1686 = vmatmul.mubr.f32.gmra.mrb[0].mxu0 %v410
        %v1687 = vpop.f32.mrb[0].mxu0
        %v1688 = vadd.f32 0.0, %v1687
        %v1689 = vpop.f32.mrb[0].mxu0
        %1690 = vmatprep.mubr.f32.mxu0 0.0
        %1691 = vmatmul.mubr.f32.gmra.mrb[0].mxu0 %v413
        %v1692 = vpop.f32.mrb[0].mxu0
        %v1693 = vadd.f32 0.0, %v1692
        %v1694 = vpop.f32.mrb[0].mxu0
        %1695 = vmatprep.mubr.f32.mxu0 0.0
        %1696 = vmatmul.mubr.f32.gmra.mrb[0].mxu0 %v416
        %v1697 = vpop.f32.mrb[0].mxu0
        %v1698 = vadd.f32 0.0, %v1697
        %v1699 = vpop.f32.mrb[0].mxu0
        %1700 = vmatprep.mubr.f32.mxu0 0.0
        %1701 = vmatmul.mubr.f32.gmra.mrb[0].mxu0 %v419
        %v1702 = vpop.f32.mrb[0].mxu0
        %v1703 = vadd.f32 0.0, %v1702
        %v1704 = vpop.f32.mrb[0].mxu0
        %1705 = vmatprep.mubr.f32.mxu0 0.0
        %1706 = vmatmul.mubr.f32.gmra.mrb[0].mxu0 %v422
        %v1707 = vpop.f32.mrb[0].mxu0
        %v1708 = vadd.f32 0.0, %v1707
        %v1709 = vpop.f32.mrb[0].mxu0
        %1710 = vmatprep.mubr.f32.mxu0 0.0
        %1711 = vmatmul.mubr.f32.gmra.mrb[0].mxu0 %v425
        %v1712 = vpop.f32.mrb[0].mxu0
        %v1713 = vadd.f32 0.0, %v1712
        %v1714 = vpop.f32.mrb[0].mxu0
        %1715 = vmatprep.mubr.f32.mxu0 0.0
        %1716 = vmatmul.mubr.f32.gmra.mrb[0].mxu0 %v428
        %v1717 = vpop.f32.mrb[0].mxu0
        %v1718 = vadd.f32 0.0, %v1717
        %v1719 = vpop.f32.mrb[0].mxu0
        %1720 = vmatprep.mubr.f32.mxu0 0.0
        %1721 = vmatmul.mubr.f32.gmra.mrb[0].mxu0 %v431
        %v1722 = vpop.f32.mrb[0].mxu0
        %v1723 = vadd.f32 0.0, %v1722
        %v1724 = vpop.f32.mrb[0].mxu0
        %1725 = vmatprep.mubr.f32.mxu0 0.0
        %1726 = vmatmul.mubr.f32.gmra.mrb[0].mxu0 %v434
        %v1727 = vpop.f32.mrb[0].mxu0
        %v1728 = vadd.f32 0.0, %v1727
        %v1729 = vpop.f32.mrb[0].mxu0
        %1730 = vmatprep.mubr.f32.mxu0 0.0
        %1731 = vmatmul.mubr.f32.gmra.mrb[0].mxu0 %v437
        %v1732 = vpop.f32.mrb[0].mxu0
        %v1733 = vadd.f32 0.0, %v1732
        %v1734 = vpop.f32.mrb[0].mxu0
        %1735 = vmatprep.mubr.f32.mxu0 0.0
        %1736 = vmatmul.mubr.f32.gmra.mrb[0].mxu0 %v440
        %v1737 = vpop.f32.mrb[0].mxu0
        %v1738 = vadd.f32 0.0, %v1737
        %v1739 = vpop.f32.mrb[0].mxu0
        %1740 = vdwg.mxu0
        %s1741 = scalar_lea.vmem %s168, 512 [#allocation2]
        %1742 = vst [vmem:[%s1741] sm:$0xff] %v1423
        %1743 = vst [vmem:[%s1741 + $0x8] sm:$0xff] %v1428
        %1744 = vst [vmem:[%s1741 + $0x10] sm:$0xff] %v1433
        %1745 = vst [vmem:[%s1741 + $0x18] sm:$0xff] %v1438
        %1746 = vst [vmem:[%s1741 + $0x20] sm:$0xff] %v1443
        %1747 = vst [vmem:[%s1741 + $0x28] sm:$0xff] %v1448
        %1748 = vst [vmem:[%s1741 + $0x30] sm:$0xff] %v1453
        %1749 = vst [vmem:[%s1741 + $0x38] sm:$0xff] %v1458
        %1750 = vst [vmem:[%s1741 + $0x40] sm:$0xff] %v1463
        %1751 = vst [vmem:[%s1741 + $0x48] sm:$0xff] %v1468
        %1752 = vst [vmem:[%s1741 + $0x50] sm:$0xff] %v1473
        %1753 = vst [vmem:[%s1741 + $0x58] sm:$0xff] %v1478
        %1754 = vst [vmem:[%s1741 + $0x60] sm:$0xff] %v1483
        %1755 = vst [vmem:[%s1741 + $0x68] sm:$0xff] %v1488
        %1756 = vst [vmem:[%s1741 + $0x70] sm:$0xff] %v1493
        %1757 = vst [vmem:[%s1741 + $0x78] sm:$0xff] %v1498
        %1758 = vst [vmem:[%s1741 + $0x80] sm:$0xff] %v1503
        %1759 = vst [vmem:[%s1741 + $0x88] sm:$0xff] %v1508
        %1760 = vst [vmem:[%s1741 + $0x90] sm:$0xff] %v1513
        %1761 = vst [vmem:[%s1741 + $0x98] sm:$0xff] %v1518
        %1762 = vst [vmem:[%s1741 + $0xa0] sm:$0xff] %v1523
        %1763 = vst [vmem:[%s1741 + $0xa8] sm:$0xff] %v1528
        %1764 = vst [vmem:[%s1741 + $0xb0] sm:$0xff] %v1533
        %1765 = vst [vmem:[%s1741 + $0xb8] sm:$0xff] %v1538
        %1766 = vst [vmem:[%s1741 + $0xc0] sm:$0xff] %v1543
        %1767 = vst [vmem:[%s1741 + $0xc8] sm:$0xff] %v1548
        %1768 = vst [vmem:[%s1741 + $0xd0] sm:$0xff] %v1553
        %1769 = vst [vmem:[%s1741 + $0xd8] sm:$0xff] %v1558
        %1770 = vst [vmem:[%s1741 + $0xe0] sm:$0xff] %v1563
        %1771 = vst [vmem:[%s1741 + $0xe8] sm:$0xff] %v1568
        %1772 = vst [vmem:[%s1741 + $0xf0] sm:$0xff] %v1573
        %1773 = vst [vmem:[%s1741 + $0xf8] sm:$0xff] %v1578
        %s1774 = scalar_lea.vmem %s175, 512 [#allocation4]
        %1775 = vst [vmem:[%s1774] sm:$0xff] %v1583
        %1776 = vst [vmem:[%s1774 + $0x8] sm:$0xff] %v1588
        %1777 = vst [vmem:[%s1774 + $0x10] sm:$0xff] %v1593
        %1778 = vst [vmem:[%s1774 + $0x18] sm:$0xff] %v1598
        %1779 = vst [vmem:[%s1774 + $0x20] sm:$0xff] %v1603
        %1780 = vst [vmem:[%s1774 + $0x28] sm:$0xff] %v1608
        %1781 = vst [vmem:[%s1774 + $0x30] sm:$0xff] %v1613
        %1782 = vst [vmem:[%s1774 + $0x38] sm:$0xff] %v1618
        %1783 = vst [vmem:[%s1774 + $0x40] sm:$0xff] %v1623
        %1784 = vst [vmem:[%s1774 + $0x48] sm:$0xff] %v1628
        %1785 = vst [vmem:[%s1774 + $0x50] sm:$0xff] %v1633
        %1786 = vst [vmem:[%s1774 + $0x58] sm:$0xff] %v1638
        %1787 = vst [vmem:[%s1774 + $0x60] sm:$0xff] %v1643
        %1788 = vst [vmem:[%s1774 + $0x68] sm:$0xff] %v1648
        %1789 = vst [vmem:[%s1774 + $0x70] sm:$0xff] %v1653
        %1790 = vst [vmem:[%s1774 + $0x78] sm:$0xff] %v1658
        %1791 = vst [vmem:[%s1774 + $0x80] sm:$0xff] %v1663
        %1792 = vst [vmem:[%s1774 + $0x88] sm:$0xff] %v1668
        %1793 = vst [vmem:[%s1774 + $0x90] sm:$0xff] %v1673
        %1794 = vst [vmem:[%s1774 + $0x98] sm:$0xff] %v1678
        %1795 = vst [vmem:[%s1774 + $0xa0] sm:$0xff] %v1683
        %1796 = vst [vmem:[%s1774 + $0xa8] sm:$0xff] %v1688
        %1797 = vst [vmem:[%s1774 + $0xb0] sm:$0xff] %v1693
        %1798 = vst [vmem:[%s1774 + $0xb8] sm:$0xff] %v1698
        %1799 = vst [vmem:[%s1774 + $0xc0] sm:$0xff] %v1703
        %1800 = vst [vmem:[%s1774 + $0xc8] sm:$0xff] %v1708
        %1801 = vst [vmem:[%s1774 + $0xd0] sm:$0xff] %v1713
        %1802 = vst [vmem:[%s1774 + $0xd8] sm:$0xff] %v1718
        %1803 = vst [vmem:[%s1774 + $0xe0] sm:$0xff] %v1723
        %1804 = vst [vmem:[%s1774 + $0xe8] sm:$0xff] %v1728
        %1805 = vst [vmem:[%s1774 + $0xf0] sm:$0xff] %v1733
        %1806 = vst [vmem:[%s1774 + $0xf8] sm:$0xff] %v1738
        %s1807 = scalar_lea.vmem %s180, 24
        %v1808 = vld [vmem:[%s1807] sm:$0x1f]
        %v1810 = vsel %vm442, %v1808, 0
        %1812 = vmatprep.subr.mxu0 0.0
        %1813 = vmatpush1.msra.mxu0 %v1810
        %1814 = vmatprep.subr.mxu0 0.0
        %1815 = vmatpush1.msra.mxu0 0.0
        %1816 = vmatprep.subr.mxu0 0.0
        %1817 = vmatpush1.msra.mxu0 0.0
        %1818 = vmatprep.subr.mxu0 0.0
        %1819 = vmatpush1.msra.mxu0 0.0
        %1820 = vmatprep.subr.mxu0 0.0
        %1821 = vmatpush1.msra.mxu0 0.0
        %1822 = vmatprep.subr.mxu0 0.0
        %1823 = vmatpush1.msra.mxu0 0.0
        %1824 = vmatprep.subr.mxu0 0.0
        %1825 = vmatpush1.msra.mxu0 0.0
        %1826 = vmatprep.subr.mxu0 0.0
        %1827 = vmatpush1.msra.mxu0 0.0
        %1828 = vmatprep.subr.mxu0 0.0
        %1829 = vmatpush1.msra.mxu0 0.0
        %1830 = vmatprep.subr.mxu0 0.0
        %1831 = vmatpush1.msra.mxu0 0.0
        %1832 = vmatprep.subr.mxu0 0.0
        %1833 = vmatpush1.msra.mxu0 0.0
        %1834 = vmatprep.subr.mxu0 0.0
        %1835 = vmatpush1.msra.mxu0 0.0
        %1836 = vmatprep.subr.mxu0 0.0
        %1837 = vmatpush1.msra.mxu0 0.0
        %1838 = vmatprep.subr.mxu0 0.0
        %1839 = vmatpush1.msra.mxu0 0.0
        %1840 = vmatprep.subr.mxu0 0.0
        %1841 = vmatpush1.msra.mxu0 0.0
        %1842 = vmatprep.subr.mxu0 0.0
        %1843 = vmatpush1.msra.mxu0 0.0
        %1844 = vmatprep.subr.mxu0 0.0
        %1845 = vmatpush1.msra.mxu0 0.0
        %1846 = vmatprep.subr.mxu0 0.0
        %1847 = vmatpush1.msra.mxu0 0.0
        %1848 = vmatprep.subr.mxu0 0.0
        %1849 = vmatpush1.msra.mxu0 0.0
        %1850 = vmatprep.subr.mxu0 0.0
        %1851 = vmatpush1.msra.mxu0 0.0
        %1852 = vmatprep.subr.mxu0 0.0
        %1853 = vmatpush1.msra.mxu0 0.0
        %1854 = vmatprep.subr.mxu0 0.0
        %1855 = vmatpush1.msra.mxu0 0.0
        %1856 = vmatprep.subr.mxu0 0.0
        %1857 = vmatpush1.msra.mxu0 0.0
        %1858 = vmatprep.subr.mxu0 0.0
        %1859 = vmatpush1.msra.mxu0 0.0
        %1860 = vmatprep.subr.mxu0 0.0
        %1861 = vmatpush1.msra.mxu0 0.0
        %1862 = vmatprep.subr.mxu0 0.0
        %1863 = vmatpush1.msra.mxu0 0.0
        %1864 = vmatprep.subr.mxu0 0.0
        %1865 = vmatpush1.msra.mxu0 0.0
        %1866 = vmatprep.subr.mxu0 0.0
        %1867 = vmatpush1.msra.mxu0 0.0
        %1868 = vmatprep.subr.mxu0 0.0
        %1869 = vmatpush1.msra.mxu0 0.0
        %1870 = vmatprep.subr.mxu0 0.0
        %1871 = vmatpush1.msra.mxu0 0.0
        %1872 = vmatprep.subr.mxu0 0.0
        %1873 = vmatpush1.msra.mxu0 0.0
        %1874 = vmatprep.subr.mxu0 0.0
        %1875 = vmatpush1.msra.mxu0 0.0
        %1876 = vmatprep.mubr.f32.mxu0 0.0
        %1877 = vmatmul.mubr.f32.gmra.mrb[0].mxu0 %v251
        %v1878 = vpop.f32.mrb[0].mxu0
        %v1879 = vadd.f32 0.0, %v1878
        %v1880 = vpop.f32.mrb[0].mxu0
        %1881 = vmatprep.mubr.f32.mxu0 0.0
        %1882 = vmatmul.mubr.f32.gmra.mrb[0].mxu0 %v254
        %v1883 = vpop.f32.mrb[0].mxu0
        %v1884 = vadd.f32 0.0, %v1883
        %v1885 = vpop.f32.mrb[0].mxu0
        %1886 = vmatprep.mubr.f32.mxu0 0.0
        %1887 = vmatmul.mubr.f32.gmra.mrb[0].mxu0 %v257
        %v1888 = vpop.f32.mrb[0].mxu0
        %v1889 = vadd.f32 0.0, %v1888
        %v1890 = vpop.f32.mrb[0].mxu0
        %1891 = vmatprep.mubr.f32.mxu0 0.0
        %1892 = vmatmul.mubr.f32.gmra.mrb[0].mxu0 %v260
        %v1893 = vpop.f32.mrb[0].mxu0
        %v1894 = vadd.f32 0.0, %v1893
        %v1895 = vpop.f32.mrb[0].mxu0
        %1896 = vmatprep.mubr.f32.mxu0 0.0
        %1897 = vmatmul.mubr.f32.gmra.mrb[0].mxu0 %v263
        %v1898 = vpop.f32.mrb[0].mxu0
        %v1899 = vadd.f32 0.0, %v1898
        %v1900 = vpop.f32.mrb[0].mxu0
        %1901 = vmatprep.mubr.f32.mxu0 0.0
        %1902 = vmatmul.mubr.f32.gmra.mrb[0].mxu0 %v266
        %v1903 = vpop.f32.mrb[0].mxu0
        %v1904 = vadd.f32 0.0, %v1903
        %v1905 = vpop.f32.mrb[0].mxu0
        %1906 = vmatprep.mubr.f32.mxu0 0.0
        %1907 = vmatmul.mubr.f32.gmra.mrb[0].mxu0 %v269
        %v1908 = vpop.f32.mrb[0].mxu0
        %v1909 = vadd.f32 0.0, %v1908
        %v1910 = vpop.f32.mrb[0].mxu0
        %1911 = vmatprep.mubr.f32.mxu0 0.0
        %1912 = vmatmul.mubr.f32.gmra.mrb[0].mxu0 %v272
        %v1913 = vpop.f32.mrb[0].mxu0
        %v1914 = vadd.f32 0.0, %v1913
        %v1915 = vpop.f32.mrb[0].mxu0
        %1916 = vmatprep.mubr.f32.mxu0 0.0
        %1917 = vmatmul.mubr.f32.gmra.mrb[0].mxu0 %v275
        %v1918 = vpop.f32.mrb[0].mxu0
        %v1919 = vadd.f32 0.0, %v1918
        %v1920 = vpop.f32.mrb[0].mxu0
        %1921 = vmatprep.mubr.f32.mxu0 0.0
        %1922 = vmatmul.mubr.f32.gmra.mrb[0].mxu0 %v278
        %v1923 = vpop.f32.mrb[0].mxu0
        %v1924 = vadd.f32 0.0, %v1923
        %v1925 = vpop.f32.mrb[0].mxu0
        %1926 = vmatprep.mubr.f32.mxu0 0.0
        %1927 = vmatmul.mubr.f32.gmra.mrb[0].mxu0 %v281
        %v1928 = vpop.f32.mrb[0].mxu0
        %v1929 = vadd.f32 0.0, %v1928
        %v1930 = vpop.f32.mrb[0].mxu0
        %1931 = vmatprep.mubr.f32.mxu0 0.0
        %1932 = vmatmul.mubr.f32.gmra.mrb[0].mxu0 %v284
        %v1933 = vpop.f32.mrb[0].mxu0
        %v1934 = vadd.f32 0.0, %v1933
        %v1935 = vpop.f32.mrb[0].mxu0
        %1936 = vmatprep.mubr.f32.mxu0 0.0
        %1937 = vmatmul.mubr.f32.gmra.mrb[0].mxu0 %v287
        %v1938 = vpop.f32.mrb[0].mxu0
        %v1939 = vadd.f32 0.0, %v1938
        %v1940 = vpop.f32.mrb[0].mxu0
        %1941 = vmatprep.mubr.f32.mxu0 0.0
        %1942 = vmatmul.mubr.f32.gmra.mrb[0].mxu0 %v290
        %v1943 = vpop.f32.mrb[0].mxu0
        %v1944 = vadd.f32 0.0, %v1943
        %v1945 = vpop.f32.mrb[0].mxu0
        %1946 = vmatprep.mubr.f32.mxu0 0.0
        %1947 = vmatmul.mubr.f32.gmra.mrb[0].mxu0 %v293
        %v1948 = vpop.f32.mrb[0].mxu0
        %v1949 = vadd.f32 0.0, %v1948
        %v1950 = vpop.f32.mrb[0].mxu0
        %1951 = vmatprep.mubr.f32.mxu0 0.0
        %1952 = vmatmul.mubr.f32.gmra.mrb[0].mxu0 %v296
        %v1953 = vpop.f32.mrb[0].mxu0
        %v1954 = vadd.f32 0.0, %v1953
        %v1955 = vpop.f32.mrb[0].mxu0
        %1956 = vmatprep.mubr.f32.mxu0 0.0
        %1957 = vmatmul.mubr.f32.gmra.mrb[0].mxu0 %v299
        %v1958 = vpop.f32.mrb[0].mxu0
        %v1959 = vadd.f32 0.0, %v1958
        %v1960 = vpop.f32.mrb[0].mxu0
        %1961 = vmatprep.mubr.f32.mxu0 0.0
        %1962 = vmatmul.mubr.f32.gmra.mrb[0].mxu0 %v302
        %v1963 = vpop.f32.mrb[0].mxu0
        %v1964 = vadd.f32 0.0, %v1963
        %v1965 = vpop.f32.mrb[0].mxu0
        %1966 = vmatprep.mubr.f32.mxu0 0.0
        %1967 = vmatmul.mubr.f32.gmra.mrb[0].mxu0 %v305
        %v1968 = vpop.f32.mrb[0].mxu0
        %v1969 = vadd.f32 0.0, %v1968
        %v1970 = vpop.f32.mrb[0].mxu0
        %1971 = vmatprep.mubr.f32.mxu0 0.0
        %1972 = vmatmul.mubr.f32.gmra.mrb[0].mxu0 %v308
        %v1973 = vpop.f32.mrb[0].mxu0
        %v1974 = vadd.f32 0.0, %v1973
        %v1975 = vpop.f32.mrb[0].mxu0
        %1976 = vmatprep.mubr.f32.mxu0 0.0
        %1977 = vmatmul.mubr.f32.gmra.mrb[0].mxu0 %v311
        %v1978 = vpop.f32.mrb[0].mxu0
        %v1979 = vadd.f32 0.0, %v1978
        %v1980 = vpop.f32.mrb[0].mxu0
        %1981 = vmatprep.mubr.f32.mxu0 0.0
        %1982 = vmatmul.mubr.f32.gmra.mrb[0].mxu0 %v314
        %v1983 = vpop.f32.mrb[0].mxu0
        %v1984 = vadd.f32 0.0, %v1983
        %v1985 = vpop.f32.mrb[0].mxu0
        %1986 = vmatprep.mubr.f32.mxu0 0.0
        %1987 = vmatmul.mubr.f32.gmra.mrb[0].mxu0 %v317
        %v1988 = vpop.f32.mrb[0].mxu0
        %v1989 = vadd.f32 0.0, %v1988
        %v1990 = vpop.f32.mrb[0].mxu0
        %1991 = vmatprep.mubr.f32.mxu0 0.0
        %1992 = vmatmul.mubr.f32.gmra.mrb[0].mxu0 %v320
        %v1993 = vpop.f32.mrb[0].mxu0
        %v1994 = vadd.f32 0.0, %v1993
        %v1995 = vpop.f32.mrb[0].mxu0
        %1996 = vmatprep.mubr.f32.mxu0 0.0
        %1997 = vmatmul.mubr.f32.gmra.mrb[0].mxu0 %v323
        %v1998 = vpop.f32.mrb[0].mxu0
        %v1999 = vadd.f32 0.0, %v1998
        %v2000 = vpop.f32.mrb[0].mxu0
        %2001 = vmatprep.mubr.f32.mxu0 0.0
        %2002 = vmatmul.mubr.f32.gmra.mrb[0].mxu0 %v326
        %v2003 = vpop.f32.mrb[0].mxu0
        %v2004 = vadd.f32 0.0, %v2003
        %v2005 = vpop.f32.mrb[0].mxu0
        %2006 = vmatprep.mubr.f32.mxu0 0.0
        %2007 = vmatmul.mubr.f32.gmra.mrb[0].mxu0 %v329
        %v2008 = vpop.f32.mrb[0].mxu0
        %v2009 = vadd.f32 0.0, %v2008
        %v2010 = vpop.f32.mrb[0].mxu0
        %2011 = vmatprep.mubr.f32.mxu0 0.0
        %2012 = vmatmul.mubr.f32.gmra.mrb[0].mxu0 %v332
        %v2013 = vpop.f32.mrb[0].mxu0
        %v2014 = vadd.f32 0.0, %v2013
        %v2015 = vpop.f32.mrb[0].mxu0
        %2016 = vmatprep.mubr.f32.mxu0 0.0
        %2017 = vmatmul.mubr.f32.gmra.mrb[0].mxu0 %v335
        %v2018 = vpop.f32.mrb[0].mxu0
        %v2019 = vadd.f32 0.0, %v2018
        %v2020 = vpop.f32.mrb[0].mxu0
        %2021 = vmatprep.mubr.f32.mxu0 0.0
        %2022 = vmatmul.mubr.f32.gmra.mrb[0].mxu0 %v338
        %v2023 = vpop.f32.mrb[0].mxu0
        %v2024 = vadd.f32 0.0, %v2023
        %v2025 = vpop.f32.mrb[0].mxu0
        %2026 = vmatprep.mubr.f32.mxu0 0.0
        %2027 = vmatmul.mubr.f32.gmra.mrb[0].mxu0 %v341
        %v2028 = vpop.f32.mrb[0].mxu0
        %v2029 = vadd.f32 0.0, %v2028
        %v2030 = vpop.f32.mrb[0].mxu0
        %2031 = vmatprep.mubr.f32.mxu0 0.0
        %2032 = vmatmul.mubr.f32.gmra.mrb[0].mxu0 %v344
        %v2033 = vpop.f32.mrb[0].mxu0
        %v2034 = vadd.f32 0.0, %v2033
        %v2035 = vpop.f32.mrb[0].mxu0
        %2036 = vmatprep.mubr.f32.mxu0 0.0
        %2037 = vmatmul.mubr.f32.gmra.mrb[0].mxu0 %v347
        %v2038 = vpop.f32.mrb[0].mxu0
        %v2039 = vadd.f32 0.0, %v2038
        %v2040 = vpop.f32.mrb[0].mxu0
        %2041 = vmatprep.mubr.f32.mxu0 0.0
        %2042 = vmatmul.mubr.f32.gmra.mrb[0].mxu0 %v350
        %v2043 = vpop.f32.mrb[0].mxu0
        %v2044 = vadd.f32 0.0, %v2043
        %v2045 = vpop.f32.mrb[0].mxu0
        %2046 = vmatprep.mubr.f32.mxu0 0.0
        %2047 = vmatmul.mubr.f32.gmra.mrb[0].mxu0 %v353
        %v2048 = vpop.f32.mrb[0].mxu0
        %v2049 = vadd.f32 0.0, %v2048
        %v2050 = vpop.f32.mrb[0].mxu0
        %2051 = vmatprep.mubr.f32.mxu0 0.0
        %2052 = vmatmul.mubr.f32.gmra.mrb[0].mxu0 %v356
        %v2053 = vpop.f32.mrb[0].mxu0
        %v2054 = vadd.f32 0.0, %v2053
        %v2055 = vpop.f32.mrb[0].mxu0
        %2056 = vmatprep.mubr.f32.mxu0 0.0
        %2057 = vmatmul.mubr.f32.gmra.mrb[0].mxu0 %v359
        %v2058 = vpop.f32.mrb[0].mxu0
        %v2059 = vadd.f32 0.0, %v2058
        %v2060 = vpop.f32.mrb[0].mxu0
        %2061 = vmatprep.mubr.f32.mxu0 0.0
        %2062 = vmatmul.mubr.f32.gmra.mrb[0].mxu0 %v362
        %v2063 = vpop.f32.mrb[0].mxu0
        %v2064 = vadd.f32 0.0, %v2063
        %v2065 = vpop.f32.mrb[0].mxu0
        %2066 = vmatprep.mubr.f32.mxu0 0.0
        %2067 = vmatmul.mubr.f32.gmra.mrb[0].mxu0 %v365
        %v2068 = vpop.f32.mrb[0].mxu0
        %v2069 = vadd.f32 0.0, %v2068
        %v2070 = vpop.f32.mrb[0].mxu0
        %2071 = vmatprep.mubr.f32.mxu0 0.0
        %2072 = vmatmul.mubr.f32.gmra.mrb[0].mxu0 %v368
        %v2073 = vpop.f32.mrb[0].mxu0
        %v2074 = vadd.f32 0.0, %v2073
        %v2075 = vpop.f32.mrb[0].mxu0
        %2076 = vmatprep.mubr.f32.mxu0 0.0
        %2077 = vmatmul.mubr.f32.gmra.mrb[0].mxu0 %v371
        %v2078 = vpop.f32.mrb[0].mxu0
        %v2079 = vadd.f32 0.0, %v2078
        %v2080 = vpop.f32.mrb[0].mxu0
        %2081 = vmatprep.mubr.f32.mxu0 0.0
        %2082 = vmatmul.mubr.f32.gmra.mrb[0].mxu0 %v374
        %v2083 = vpop.f32.mrb[0].mxu0
        %v2084 = vadd.f32 0.0, %v2083
        %v2085 = vpop.f32.mrb[0].mxu0
        %2086 = vmatprep.mubr.f32.mxu0 0.0
        %2087 = vmatmul.mubr.f32.gmra.mrb[0].mxu0 %v377
        %v2088 = vpop.f32.mrb[0].mxu0
        %v2089 = vadd.f32 0.0, %v2088
        %v2090 = vpop.f32.mrb[0].mxu0
        %2091 = vmatprep.mubr.f32.mxu0 0.0
        %2092 = vmatmul.mubr.f32.gmra.mrb[0].mxu0 %v380
        %v2093 = vpop.f32.mrb[0].mxu0
        %v2094 = vadd.f32 0.0, %v2093
        %v2095 = vpop.f32.mrb[0].mxu0
        %2096 = vmatprep.mubr.f32.mxu0 0.0
        %2097 = vmatmul.mubr.f32.gmra.mrb[0].mxu0 %v383
        %v2098 = vpop.f32.mrb[0].mxu0
        %v2099 = vadd.f32 0.0, %v2098
        %v2100 = vpop.f32.mrb[0].mxu0
        %2101 = vmatprep.mubr.f32.mxu0 0.0
        %2102 = vmatmul.mubr.f32.gmra.mrb[0].mxu0 %v386
        %v2103 = vpop.f32.mrb[0].mxu0
        %v2104 = vadd.f32 0.0, %v2103
        %v2105 = vpop.f32.mrb[0].mxu0
        %2106 = vmatprep.mubr.f32.mxu0 0.0
        %2107 = vmatmul.mubr.f32.gmra.mrb[0].mxu0 %v389
        %v2108 = vpop.f32.mrb[0].mxu0
        %v2109 = vadd.f32 0.0, %v2108
        %v2110 = vpop.f32.mrb[0].mxu0
        %2111 = vmatprep.mubr.f32.mxu0 0.0
        %2112 = vmatmul.mubr.f32.gmra.mrb[0].mxu0 %v392
        %v2113 = vpop.f32.mrb[0].mxu0
        %v2114 = vadd.f32 0.0, %v2113
        %v2115 = vpop.f32.mrb[0].mxu0
        %2116 = vmatprep.mubr.f32.mxu0 0.0
        %2117 = vmatmul.mubr.f32.gmra.mrb[0].mxu0 %v395
        %v2118 = vpop.f32.mrb[0].mxu0
        %v2119 = vadd.f32 0.0, %v2118
        %v2120 = vpop.f32.mrb[0].mxu0
        %2121 = vmatprep.mubr.f32.mxu0 0.0
        %2122 = vmatmul.mubr.f32.gmra.mrb[0].mxu0 %v398
        %v2123 = vpop.f32.mrb[0].mxu0
        %v2124 = vadd.f32 0.0, %v2123
        %v2125 = vpop.f32.mrb[0].mxu0
        %2126 = vmatprep.mubr.f32.mxu0 0.0
        %2127 = vmatmul.mubr.f32.gmra.mrb[0].mxu0 %v401
        %v2128 = vpop.f32.mrb[0].mxu0
        %v2129 = vadd.f32 0.0, %v2128
        %v2130 = vpop.f32.mrb[0].mxu0
        %2131 = vmatprep.mubr.f32.mxu0 0.0
        %2132 = vmatmul.mubr.f32.gmra.mrb[0].mxu0 %v404
        %v2133 = vpop.f32.mrb[0].mxu0
        %v2134 = vadd.f32 0.0, %v2133
        %v2135 = vpop.f32.mrb[0].mxu0
        %2136 = vmatprep.mubr.f32.mxu0 0.0
        %2137 = vmatmul.mubr.f32.gmra.mrb[0].mxu0 %v407
        %v2138 = vpop.f32.mrb[0].mxu0
        %v2139 = vadd.f32 0.0, %v2138
        %v2140 = vpop.f32.mrb[0].mxu0
        %2141 = vmatprep.mubr.f32.mxu0 0.0
        %2142 = vmatmul.mubr.f32.gmra.mrb[0].mxu0 %v410
        %v2143 = vpop.f32.mrb[0].mxu0
        %v2144 = vadd.f32 0.0, %v2143
        %v2145 = vpop.f32.mrb[0].mxu0
        %2146 = vmatprep.mubr.f32.mxu0 0.0
        %2147 = vmatmul.mubr.f32.gmra.mrb[0].mxu0 %v413
        %v2148 = vpop.f32.mrb[0].mxu0
        %v2149 = vadd.f32 0.0, %v2148
        %v2150 = vpop.f32.mrb[0].mxu0
        %2151 = vmatprep.mubr.f32.mxu0 0.0
        %2152 = vmatmul.mubr.f32.gmra.mrb[0].mxu0 %v416
        %v2153 = vpop.f32.mrb[0].mxu0
        %v2154 = vadd.f32 0.0, %v2153
        %v2155 = vpop.f32.mrb[0].mxu0
        %2156 = vmatprep.mubr.f32.mxu0 0.0
        %2157 = vmatmul.mubr.f32.gmra.mrb[0].mxu0 %v419
        %v2158 = vpop.f32.mrb[0].mxu0
        %v2159 = vadd.f32 0.0, %v2158
        %v2160 = vpop.f32.mrb[0].mxu0
        %2161 = vmatprep.mubr.f32.mxu0 0.0
        %2162 = vmatmul.mubr.f32.gmra.mrb[0].mxu0 %v422
        %v2163 = vpop.f32.mrb[0].mxu0
        %v2164 = vadd.f32 0.0, %v2163
        %v2165 = vpop.f32.mrb[0].mxu0
        %2166 = vmatprep.mubr.f32.mxu0 0.0
        %2167 = vmatmul.mubr.f32.gmra.mrb[0].mxu0 %v425
        %v2168 = vpop.f32.mrb[0].mxu0
        %v2169 = vadd.f32 0.0, %v2168
        %v2170 = vpop.f32.mrb[0].mxu0
        %2171 = vmatprep.mubr.f32.mxu0 0.0
        %2172 = vmatmul.mubr.f32.gmra.mrb[0].mxu0 %v428
        %v2173 = vpop.f32.mrb[0].mxu0
        %v2174 = vadd.f32 0.0, %v2173
        %v2175 = vpop.f32.mrb[0].mxu0
        %2176 = vmatprep.mubr.f32.mxu0 0.0
        %2177 = vmatmul.mubr.f32.gmra.mrb[0].mxu0 %v431
        %v2178 = vpop.f32.mrb[0].mxu0
        %v2179 = vadd.f32 0.0, %v2178
        %v2180 = vpop.f32.mrb[0].mxu0
        %2181 = vmatprep.mubr.f32.mxu0 0.0
        %2182 = vmatmul.mubr.f32.gmra.mrb[0].mxu0 %v434
        %v2183 = vpop.f32.mrb[0].mxu0
        %v2184 = vadd.f32 0.0, %v2183
        %v2185 = vpop.f32.mrb[0].mxu0
        %2186 = vmatprep.mubr.f32.mxu0 0.0
        %2187 = vmatmul.mubr.f32.gmra.mrb[0].mxu0 %v437
        %v2188 = vpop.f32.mrb[0].mxu0
        %v2189 = vadd.f32 0.0, %v2188
        %v2190 = vpop.f32.mrb[0].mxu0
        %2191 = vmatprep.mubr.f32.mxu0 0.0
        %2192 = vmatmul.mubr.f32.gmra.mrb[0].mxu0 %v440
        %v2193 = vpop.f32.mrb[0].mxu0
        %v2194 = vadd.f32 0.0, %v2193
        %v2195 = vpop.f32.mrb[0].mxu0
        %2196 = vdwg.mxu0
        %s2197 = scalar_lea.vmem %s168, 768 [#allocation2]
        %2198 = vst [vmem:[%s2197] sm:$0xff] %v1879
        %2199 = vst [vmem:[%s2197 + $0x8] sm:$0xff] %v1884
        %2200 = vst [vmem:[%s2197 + $0x10] sm:$0xff] %v1889
        %2201 = vst [vmem:[%s2197 + $0x18] sm:$0xff] %v1894
        %2202 = vst [vmem:[%s2197 + $0x20] sm:$0xff] %v1899
        %2203 = vst [vmem:[%s2197 + $0x28] sm:$0xff] %v1904
        %2204 = vst [vmem:[%s2197 + $0x30] sm:$0xff] %v1909
        %2205 = vst [vmem:[%s2197 + $0x38] sm:$0xff] %v1914
        %2206 = vst [vmem:[%s2197 + $0x40] sm:$0xff] %v1919
        %2207 = vst [vmem:[%s2197 + $0x48] sm:$0xff] %v1924
        %2208 = vst [vmem:[%s2197 + $0x50] sm:$0xff] %v1929
        %2209 = vst [vmem:[%s2197 + $0x58] sm:$0xff] %v1934
        %2210 = vst [vmem:[%s2197 + $0x60] sm:$0xff] %v1939
        %2211 = vst [vmem:[%s2197 + $0x68] sm:$0xff] %v1944
        %2212 = vst [vmem:[%s2197 + $0x70] sm:$0xff] %v1949
        %2213 = vst [vmem:[%s2197 + $0x78] sm:$0xff] %v1954
        %2214 = vst [vmem:[%s2197 + $0x80] sm:$0xff] %v1959
        %2215 = vst [vmem:[%s2197 + $0x88] sm:$0xff] %v1964
        %2216 = vst [vmem:[%s2197 + $0x90] sm:$0xff] %v1969
        %2217 = vst [vmem:[%s2197 + $0x98] sm:$0xff] %v1974
        %2218 = vst [vmem:[%s2197 + $0xa0] sm:$0xff] %v1979
        %2219 = vst [vmem:[%s2197 + $0xa8] sm:$0xff] %v1984
        %2220 = vst [vmem:[%s2197 + $0xb0] sm:$0xff] %v1989
        %2221 = vst [vmem:[%s2197 + $0xb8] sm:$0xff] %v1994
        %2222 = vst [vmem:[%s2197 + $0xc0] sm:$0xff] %v1999
        %2223 = vst [vmem:[%s2197 + $0xc8] sm:$0xff] %v2004
        %2224 = vst [vmem:[%s2197 + $0xd0] sm:$0xff] %v2009
        %2225 = vst [vmem:[%s2197 + $0xd8] sm:$0xff] %v2014
        %2226 = vst [vmem:[%s2197 + $0xe0] sm:$0xff] %v2019
        %2227 = vst [vmem:[%s2197 + $0xe8] sm:$0xff] %v2024
        %2228 = vst [vmem:[%s2197 + $0xf0] sm:$0xff] %v2029
        %2229 = vst [vmem:[%s2197 + $0xf8] sm:$0xff] %v2034
        %s2230 = scalar_lea.vmem %s175, 768 [#allocation4]
        %2231 = vst [vmem:[%s2230] sm:$0xff] %v2039
        %2232 = vst [vmem:[%s2230 + $0x8] sm:$0xff] %v2044
        %2233 = vst [vmem:[%s2230 + $0x10] sm:$0xff] %v2049
        %2234 = vst [vmem:[%s2230 + $0x18] sm:$0xff] %v2054
        %2235 = vst [vmem:[%s2230 + $0x20] sm:$0xff] %v2059
        %2236 = vst [vmem:[%s2230 + $0x28] sm:$0xff] %v2064
        %2237 = vst [vmem:[%s2230 + $0x30] sm:$0xff] %v2069
        %2238 = vst [vmem:[%s2230 + $0x38] sm:$0xff] %v2074
        %2239 = vst [vmem:[%s2230 + $0x40] sm:$0xff] %v2079
        %2240 = vst [vmem:[%s2230 + $0x48] sm:$0xff] %v2084
        %2241 = vst [vmem:[%s2230 + $0x50] sm:$0xff] %v2089
        %2242 = vst [vmem:[%s2230 + $0x58] sm:$0xff] %v2094
        %2243 = vst [vmem:[%s2230 + $0x60] sm:$0xff] %v2099
        %2244 = vst [vmem:[%s2230 + $0x68] sm:$0xff] %v2104
        %2245 = vst [vmem:[%s2230 + $0x70] sm:$0xff] %v2109
        %2246 = vst [vmem:[%s2230 + $0x78] sm:$0xff] %v2114
        %2247 = vst [vmem:[%s2230 + $0x80] sm:$0xff] %v2119
        %2248 = vst [vmem:[%s2230 + $0x88] sm:$0xff] %v2124
        %2249 = vst [vmem:[%s2230 + $0x90] sm:$0xff] %v2129
        %2250 = vst [vmem:[%s2230 + $0x98] sm:$0xff] %v2134
        %2251 = vst [vmem:[%s2230 + $0xa0] sm:$0xff] %v2139
        %2252 = vst [vmem:[%s2230 + $0xa8] sm:$0xff] %v2144
        %2253 = vst [vmem:[%s2230 + $0xb0] sm:$0xff] %v2149
        %2254 = vst [vmem:[%s2230 + $0xb8] sm:$0xff] %v2154
        %2255 = vst [vmem:[%s2230 + $0xc0] sm:$0xff] %v2159
        %2256 = vst [vmem:[%s2230 + $0xc8] sm:$0xff] %v2164
        %2257 = vst [vmem:[%s2230 + $0xd0] sm:$0xff] %v2169
        %2258 = vst [vmem:[%s2230 + $0xd8] sm:$0xff] %v2174
        %2259 = vst [vmem:[%s2230 + $0xe0] sm:$0xff] %v2179
        %2260 = vst [vmem:[%s2230 + $0xe8] sm:$0xff] %v2184
        %2261 = vst [vmem:[%s2230 + $0xf0] sm:$0xff] %v2189
        %2262 = vst [vmem:[%s2230 + $0xf8] sm:$0xff] %v2194
        %s2263 = sand.u32 %s76, 1
        %s2264 = scalar_lea.sflag [#allocation3], %s2263
        %s2265 = sand.u32 %s76, 1
        %s2266 = smul.addr %s2265, 1024
        %s2267 = scalar_lea.vmem [#allocation2], %s2266
        %s2268 = sand.u32 %s102, 1
        %s2269 = scalar_lea.sflag [#allocation5], %s2268
        %s2270 = sand.u32 %s102, 1
        %s2271 = smul.addr %s2270, 1024
        %s2272 = scalar_lea.vmem [#allocation4], %s2271
        // Predicated region
        $region29: #{tpu_custom_call.1} parent=27 // pred_check
          %p2273 = pneg %p86
        $region30: #{tpu_custom_call.1} parent=27 // pred_check_branch
          %2275 = sbr.rel (%p2273) target = $region32
        $region31: #{tpu_custom_call.1} parent=27 // pred_region
          %s2276 = smul.u32 4, %s21
          %s2278 = ssub.s32 16384, 16384
          %2279 = vsyncadd %s2264, %s2278
          %s2280 = smul.addr %s2276, 32
          %s2281 = smul.addr %s2280, 128
          %s2282 = scalar_lea.hbm %s2, %s2281
          %s2283 = sshll.u32 %s2267, 4
          %s2284 = int_to_ptr.vmem [resolvable:$true] %s2283
          %2289 = dma.vmem_to_hbm [thread:$0]  %s2284, 16384, %s2282, %s2264, 128, 128, 8
        $region32: #{tpu_custom_call.1} parent=27 // pred_fallthru
          _
        // Predicated region
        $region33: #{tpu_custom_call.1} parent=27 // pred_check
          %p2290 = pneg %p112
        $region34: #{tpu_custom_call.1} parent=27 // pred_check_branch
          %2292 = sbr.rel (%p2290) target = $region36
        $region35: #{tpu_custom_call.1} parent=27 // pred_region
          %s2293 = smul.u32 4, %s21
          %s2295 = ssub.s32 16384, 16384
          %2296 = vsyncadd %s2269, %s2295
          %s2297 = smul.addr %s2293, 32
          %s2298 = smul.addr %s2297, 128
          %s2299 = scalar_lea.hbm %s3, %s2298
          %s2300 = sshll.u32 %s2272, 4
          %s2301 = int_to_ptr.vmem [resolvable:$true] %s2300
          %2306 = dma.vmem_to_hbm [thread:$0]  %s2301, 16384, %s2299, %s2269, 128, 128, 8
        $region36: #{tpu_custom_call.1} parent=27 // pred_fallthru
          _
      $region28: #{tpu_custom_call.1} parent=5 // pred_fallthru
        _
      %p2307 = scmp.le.s32.totalorder 2, %s16
      // Predicated region
      $region37: #{tpu_custom_call.1} parent=5 // pred_check
        %p2308 = pneg %p2307
      $region38: #{tpu_custom_call.1} parent=5 // pred_check_branch
        %2310 = sbr.rel (%p2308) target = $region40
      $region39: #{tpu_custom_call.1} parent=5 // pred_region
        %s2311 = ssub.s32 %s16, 2
        // Predicated region
        $region41: #{tpu_custom_call.1} parent=39 // pred_check
          %p2312 = pneg %p92
        $region42: #{tpu_custom_call.1} parent=39 // pred_check_branch
          %2314 = sbr.rel (%p2312) target = $region44
        $region43: #{tpu_custom_call.1} parent=39 // pred_region
          %s2315 = sand.u32 %s77, 1
          %s2316 = scalar_lea.sflag [#allocation3], %s2315
          %s2317 = sand.u32 %s77, 1
          %s2318 = smul.addr %s2317, 1024
          %s2319 = scalar_lea.vmem [#allocation2], %s2318
          %2320 = dma.done %s2316, 16384
        $region44: #{tpu_custom_call.1} parent=39 // pred_fallthru
          _
        // Predicated region
        $region45: #{tpu_custom_call.1} parent=39 // pred_check
          %p2321 = pneg %p118
        $region46: #{tpu_custom_call.1} parent=39 // pred_check_branch
          %2323 = sbr.rel (%p2321) target = $region48
        $region47: #{tpu_custom_call.1} parent=39 // pred_region
          %s2324 = sand.u32 %s103, 1
          %s2325 = scalar_lea.sflag [#allocation5], %s2324
          %s2326 = sand.u32 %s103, 1
          %s2327 = smul.addr %s2326, 1024
          %s2328 = scalar_lea.vmem [#allocation4], %s2327
          %2329 = dma.done %s2325, 16384
        $region48: #{tpu_custom_call.1} parent=39 // pred_fallthru
          _
      $region40: #{tpu_custom_call.1} parent=5 // pred_fallthru
        _
    $region6: #{tpu_custom_call.1} parent=1 // loop_footer
      %s20 = sadd.s32 1, %s16
    $region7: #{tpu_custom_call.1} parent=1 // loop_footer_branch
      %15 = sbr.rel target = $region3
    $region8: #{tpu_custom_call.1} parent=1 // loop_exit
      _
    %2330 = vsyncpa [#allocation3], 1
    %s2331 = scalar_lea.sflag [#allocation3], 1
    %2332 = vsyncpa %s2331, 1
    %2333 = vsyncpa [#allocation5], 1
    %s2334 = scalar_lea.sflag [#allocation5], 1
    %2335 = vsyncpa %s2334, 1

</llo_original>
